<compile_context>
chip_gen: v7x
topology: tpu7x:2x2x1
jax: 0.10.0
libtpu: 0.0.40
codegen_flags: <defaults>
</compile_context>

<pallas_src>
import functools

import jax
import jax.numpy as jnp
from jax import lax
from jax.experimental import pallas as pl
from jax.experimental.pallas import tpu as pltpu


_LEFT_PAD = 8  # interior columns start sublane-aligned inside the padded scratch


def _geom(H, W, stride):
    """Geometry shared between wrapper and kernel."""
    Ho = (H - 1) // stride + 1
    Wo = (W - 1) // stride + 1
    Wspan = stride * (Wo - 1) + 1                # contiguous column span read per tap
    Hp = stride * Ho + 2                         # top halo + image rows + bottom halo/guard
    Wp = _LEFT_PAD + ((W + 1 + 7) // 8) * 8      # aligned interior + >=1 right halo column
    return Ho, Wo, Wspan, Hp, Wp


# ----------------------------------------------------------------------------
# Fused kernel: one batch element per grid step.
#   x_ref   : (H*W, Cin)       NHWC image, spatial flattened on sublanes
#   o_ref   : (Ho*Wo, Cout)
#   pad_ref : (Hp, Wp, G) f32 scratch: zero-padded conv_sep output; image row h
#             lives at pad_ref[h+1, LP:LP+W, :].
# ----------------------------------------------------------------------------
def _depth_wise_kernel(x_ref, w_sep_ref, sep_s_ref, sep_b_ref, sep_a_ref,
                       w_dw_ref, dw_s_ref, dw_b_ref, dw_a_ref,
                       w_proj_ref, proj_s_ref, proj_b_ref, *rest,
                       H, W, stride, residual):
    if stride > 1:
        sel_ref, o_ref, pad_ref = rest
    else:
        o_ref, pad_ref = rest
        sel_ref = None

    f32 = jnp.float32
    Ho, Wo, Wspan, _, _ = _geom(H, W, stride)
    Hp, Wp, G = pad_ref.shape
    LP = _LEFT_PAD

    # Hoist the small per-channel operands once per grid step.
    sep_s, sep_b, sep_a = sep_s_ref[...], sep_b_ref[...], sep_a_ref[...]     # (1, G)
    wd = w_dw_ref[...].astype(f32)                                           # (9, G)
    w_taps = [wd[k:k + 1, :].reshape(1, 1, G) for k in range(9)]             # hoisted taps
    dw_s = dw_s_ref[...].reshape(1, 1, G)
    dw_b = dw_b_ref[...].reshape(1, 1, G)
    dw_a = dw_a_ref[...].reshape(1, 1, G)
    proj_s, proj_b = proj_s_ref[...], proj_b_ref[...]                        # (1, Cout)

    # ---- Halo-only zeroing (the interior is fully overwritten by Stage 1). ----
    pad_ref[:, 0:LP, :] = jnp.zeros((Hp, LP, G), f32)                        # left pad cols
    pad_ref[:, LP + W:Wp, :] = jnp.zeros((Hp, Wp - LP - W, G), f32)          # right pad cols
    pad_ref[0:1, LP:LP + W, :] = jnp.zeros((1, W, G), f32)                   # top halo row
    pad_ref[H + 1:Hp, LP:LP + W, :] = jnp.zeros((Hp - H - 1, W, G), f32)     # bottom halo rows

    # ---- Stage 1: conv_sep (1x1) + BN + PReLU, ONE whole-image MXU matmul. ----
    y = jnp.dot(x_ref[...], w_sep_ref[...], preferred_element_type=f32)      # (H*W, G)
    y = y * sep_s + sep_b
    y = jnp.where(y > 0, y, sep_a * y)
    # Single aligned store into the padded scratch (intermediate never hits HBM).
    # TODO(synk): for W % 8 != 0 this reshape costs a one-off in-VMEM relayout.
    pad_ref[1:H + 1, LP:LP + W, :] = y.reshape(H, W, G)

    # ---- Stage 2: 3x3 depthwise (stride) as 9 whole-image VPU taps fed by
    #      three block loads of the padded scratch (one per kernel row ky). ----
    acc = jnp.zeros((Ho, Wspan, G), f32)
    for ky in range(3):
        if stride == 1:
            blk = pad_ref[ky:ky + Ho, LP - 1:LP + 1 + Wspan, :]              # (Ho, Wspan+2, G)
        else:
            raw = pad_ref[ky:ky + stride * Ho, LP - 1:LP + 1 + Wspan, :]     # (stride*Ho, ., G)
            # Drop the unused row parity BEFORE multiplying (leading dims only).
            blk = raw.reshape(Ho, stride, Wspan + 2, G)[:, 0, :, :]
        for kx in range(3):
            acc = acc + blk[:, kx:kx + Wspan, :] * w_taps[3 * ky + kx]

    # Column downsample for stride > 1: ONE batched selection matmul over all rows.
    if stride > 1:
        sel = jnp.broadcast_to(sel_ref[...].astype(f32)[None], (Ho, Wo, Wspan))
        acc = jnp.einsum("how,hwg->hog", sel, acc,
                         preferred_element_type=f32)                         # (Ho, Wo, G)

    # conv_dw BN + PReLU (elementwise, commutes with the column selection).
    acc = acc * dw_s + dw_b
    acc = jnp.where(acc > 0, acc, dw_a * acc)

    # ---- Stage 3: conv_proj (1x1) + BN (+ residual), ONE (Ho*Wo, G) matmul. ----
    act2 = acc.reshape(Ho * Wo, G)
    out = jnp.dot(act2, w_proj_ref[...], preferred_element_type=f32)         # (Ho*Wo, Cout)
    out = out * proj_s + proj_b
    if residual:   # stride == 1 and in_c == out_c -> rows line up exactly
        out = out + x_ref[...].astype(f32)
    o_ref[...] = out.astype(o_ref.dtype)


# ----------------------------------------------------------------------------
# Wrapper: layout plumbing (free reshapes + one transpose each way) and the
# single pallas_call.
# ----------------------------------------------------------------------------
def depth_wise_forward(x_nchw, p, *, stride=2, residual=False, matmul_dtype=None):
    N, Cin, H, W = x_nchw.shape
    G = p["w_sep"].shape[1]
    Cout = p["w_proj"].shape[1]
    Ho, Wo, Wspan, Hp, Wp = _geom(H, W, stride)
    HW, HoWo = H * W, Ho * Wo
    if residual:
        assert stride == 1 and Cin == Cout, "residual needs stride=1 and in_c==out_c"

    mm_dt = jnp.float32 if matmul_dtype is None else matmul_dtype

    # NCHW -> NHWC with flattened spatial (channels on the 128-lane axis).
    x2 = jnp.transpose(x_nchw, (0, 2, 3, 1)).reshape(N, HW, Cin).astype(mm_dt)

    def cvec(v, c):  # per-channel vector -> (1, C) f32 for lane broadcast
        return jnp.asarray(v, jnp.float32).reshape(1, c)

    operands = [
        x2,
        jnp.asarray(p["w_sep"], mm_dt),
        cvec(p["sep_scale"], G), cvec(p["sep_bias"], G), cvec(p["a_sep"], G),
        jnp.asarray(p["w_dw"], jnp.float32).reshape(9, G),
        cvec(p["dw_scale"], G), cvec(p["dw_bias"], G), cvec(p["a_dw"], G),
        jnp.asarray(p["w_proj"], mm_dt),
        cvec(p["proj_scale"], Cout), cvec(p["proj_bias"], Cout),
    ]
    in_specs = [
        pl.BlockSpec((None, HW, Cin), lambda n: (n, 0, 0)),   # x (2D in kernel)
        pl.BlockSpec((Cin, G), lambda n: (0, 0)),             # w_sep
        pl.BlockSpec((1, G), lambda n: (0, 0)),               # sep scale
        pl.BlockSpec((1, G), lambda n: (0, 0)),               # sep bias
        pl.BlockSpec((1, G), lambda n: (0, 0)),               # sep prelu alpha
        pl.BlockSpec((9, G), lambda n: (0, 0)),               # w_dw taps
        pl.BlockSpec((1, G), lambda n: (0, 0)),               # dw scale
        pl.BlockSpec((1, G), lambda n: (0, 0)),               # dw bias
        pl.BlockSpec((1, G), lambda n: (0, 0)),               # dw prelu alpha
        pl.BlockSpec((G, Cout), lambda n: (0, 0)),            # w_proj
        pl.BlockSpec((1, Cout), lambda n: (0, 0)),            # proj scale
        pl.BlockSpec((1, Cout), lambda n: (0, 0)),            # proj bias
    ]
    if stride > 1:
        # Column-downsample selection matrix: sel[wo, w] = (w == stride * wo).
        sel = (jnp.arange(Wo, dtype=jnp.int32)[:, None] * stride
               == jnp.arange(Wspan, dtype=jnp.int32)[None, :]).astype(jnp.float32)
        operands.append(sel)
        in_specs.append(pl.BlockSpec((Wo, Wspan), lambda n: (0, 0)))

    kern = functools.partial(_depth_wise_kernel, H=H, W=W, stride=stride,
                             residual=residual)

    # Per-step VMEM footprint (bytes): pipelined blocks + scratch + the large
    # in-kernel intermediates, with headroom for compiler temporaries.
    est = 4 * (2 * HW * Cin + 2 * HoWo * Cout              # double-buffered in/out blocks
               + Hp * Wp * G                               # padded sep scratch
               + HW * G                                    # stage-1 result
               + 3 * Ho * (Wspan + 2) * G                  # tap block + accumulator
               + Ho * Wo * G + HoWo * Cout                 # activated rows + proj result
               + (Ho * Wo * Wspan if stride > 1 else 0)    # broadcast selection matrix
               + 2 * (Cin * G + 9 * G + G * Cout + 6 * G + 4 * Cout
                      + (Wo * Wspan if stride > 1 else 0)))
    est = int(est * 3 // 2)
    try:
        vmem_cap = int(pltpu.get_tpu_info().vmem_capacity_bytes)
    except Exception:
        vmem_cap = 64 * 2 ** 20     # conservative (v7x-sized) fallback
    vmem_limit = int(max(16 * 2 ** 20, min(est, vmem_cap - 24 * 2 ** 20)))

    cost = pl.CostEstimate(
        flops=int(N * (2 * HW * Cin * G                    # conv_sep
                       + 18 * Ho * Wspan * G               # 3x3 depthwise taps
                       + (2 * Ho * Wo * Wspan * G if stride > 1 else 0)
                       + 2 * HoWo * G * Cout               # conv_proj
                       + 6 * HW * G + 6 * HoWo * G + 2 * HoWo * Cout)),
        transcendentals=0,
        bytes_accessed=int(N * (HW * Cin + HoWo * Cout) * 4
                           + (Cin * G + 9 * G + G * Cout + 6 * G + 2 * Cout) * 4
                           + (Wo * Wspan * 4 if stride > 1 else 0)))

    out2 = pl.pallas_call(
        kern,
        out_shape=jax.ShapeDtypeStruct((N, HoWo, Cout), x_nchw.dtype),
        grid=(N,),
        in_specs=in_specs,
        out_specs=pl.BlockSpec((None, HoWo, Cout), lambda n: (n, 0, 0)),
        scratch_shapes=[pltpu.VMEM((Hp, Wp, G), jnp.float32)],
        compiler_params=pltpu.CompilerParams(
            dimension_semantics=("parallel",),
            vmem_limit_bytes=vmem_limit),
        cost_estimate=cost,
    )(*operands)

    return jnp.transpose(out2.reshape(N, Ho, Wo, Cout), (0, 3, 1, 2))


def fold_bn(gamma, beta, mean, var, eps=1e-3):
    # eps=1e-3 matches BatchNorm2d(out_c, eps=0.001) in the PyTorch module.
    scale = gamma / jnp.sqrt(var + eps)
    bias = beta - mean * scale
    return scale.astype(jnp.float32), bias.astype(jnp.float32)


# Pure-JAX reference (for correctness checking only).
def _ref_forward(x_nchw, p, *, stride=2, residual=False):
    x = jnp.transpose(x_nchw, (0, 2, 3, 1))
    y = jnp.einsum("nhwc,co->nhwo", x, p["w_sep"]) * p["sep_scale"] + p["sep_bias"]
    y = jnp.where(y > 0, y, p["a_sep"] * y)
    w = p["w_dw"].reshape(3, 3, 1, -1)
    y = lax.conv_general_dilated(y, w, (stride, stride), ((1, 1), (1, 1)),
                                 dimension_numbers=("NHWC", "HWIO", "NHWC"),
                                 feature_group_count=y.shape[-1])
    y = y * p["dw_scale"] + p["dw_bias"]
    y = jnp.where(y > 0, y, p["a_dw"] * y)
    y = jnp.einsum("nhwc,co->nhwo", y, p["w_proj"]) * p["proj_scale"] + p["proj_bias"]
    if residual:
        y = y + x
    return jnp.transpose(y, (0, 3, 1, 2))


if __name__ == "__main__":
    def bn_fold(k, c):
        k1, k2, k3, k4 = jax.random.split(k, 4)
        gamma = 0.5 + jax.random.uniform(k1, (c,), jnp.float32)
        beta = 0.1 * jax.random.normal(k2, (c,), jnp.float32)
        mean = 0.1 * jax.random.normal(k3, (c,), jnp.float32)
        var = 0.5 + jax.random.uniform(k4, (c,), jnp.float32)
        return fold_bn(gamma, beta, mean, var)

    def make_params(key, in_c, groups, out_c):
        ks = jax.random.split(key, 8)
        sep_scale, sep_bias = bn_fold(ks[1], groups)
        dw_scale, dw_bias = bn_fold(ks[3], groups)
        proj_scale, proj_bias = bn_fold(ks[5], out_c)
        return {
            # conv_sep weight (groups,in_c,1,1) -> (in_c, groups)
            "w_sep": 0.2 * jax.random.normal(ks[0], (in_c, groups), jnp.float32),
            "sep_scale": sep_scale, "sep_bias": sep_bias,
            "a_sep": 0.25 + 0.01 * jax.random.normal(ks[6], (groups,), jnp.float32),
            # conv_dw weight (groups,1,3,3) -> (3,3,groups)
            "w_dw": 0.2 * jax.random.normal(ks[2], (3, 3, groups), jnp.float32),
            "dw_scale": dw_scale, "dw_bias": dw_bias,
            "a_dw": 0.25 + 0.01 * jax.random.normal(ks[7], (groups,), jnp.float32),
            # conv_proj weight (out_c,groups,1,1) -> (groups, out_c)
            "w_proj": 0.2 * jax.random.normal(ks[4], (groups, out_c), jnp.float32),
            "proj_scale": proj_scale, "proj_bias": proj_bias,
        }

    key = jax.random.PRNGKey(0)
    k_a, k_b, kx_a, kx_b = jax.random.split(key, 4)

    # Config A: downsampling Depth_Wise block (stride 2, no residual).
    N, in_c, H, W = 2, 4, 16, 16
    groups, out_c, stride = 8, 8, 2
    params_a = make_params(k_a, in_c, groups, out_c)
    x_a = jax.random.normal(kx_a, (N, in_c, H, W), jnp.float32)
    out_a = jax.block_until_ready(
        depth_wise_forward(x_a, params_a, stride=stride, residual=False))
    ref_a = _ref_forward(x_a, params_a, stride=stride, residual=False)
    assert out_a.shape == (N, out_c, H // stride, W // stride), out_a.shape
    err_a = float(jnp.max(jnp.abs(out_a - ref_a)))
    assert jnp.allclose(out_a, ref_a, atol=2e-4, rtol=2e-4), err_a

    # Config B: residual Depth_Wise block (stride 1, in_c == out_c).
    N, in_c, H, W = 2, 8, 8, 8
    groups, out_c, stride = 16, 8, 1
    params_b = make_params(k_b, in_c, groups, out_c)
    x_b = jax.random.normal(kx_b, (N, in_c, H, W), jnp.float32)
    out_b = jax.block_until_ready(
        depth_wise_forward(x_b, params_b, stride=stride, residual=True))
    ref_b = _ref_forward(x_b, params_b, stride=stride, residual=True)
    assert out_b.shape == (N, out_c, H, W), out_b.shape
    err_b = float(jnp.max(jnp.abs(out_b - ref_b)))
    assert jnp.allclose(out_b, ref_b, atol=2e-4, rtol=2e-4), err_b

    print("KERNEL_OK")
</pallas_src>

<mosaic_0001>
module attributes {stable_mosaic.version = 11 : i64} {
  func.func @_depth_wise_kernel(%arg0: i32, %arg1: memref<1x256x4xf32, #tpu.memory_space<vmem>>, %arg2: memref<4x8xf32, #tpu.memory_space<vmem>>, %arg3: memref<1x8xf32, #tpu.memory_space<vmem>>, %arg4: memref<1x8xf32, #tpu.memory_space<vmem>>, %arg5: memref<1x8xf32, #tpu.memory_space<vmem>>, %arg6: memref<9x8xf32, #tpu.memory_space<vmem>>, %arg7: memref<1x8xf32, #tpu.memory_space<vmem>>, %arg8: memref<1x8xf32, #tpu.memory_space<vmem>>, %arg9: memref<1x8xf32, #tpu.memory_space<vmem>>, %arg10: memref<8x8xf32, #tpu.memory_space<vmem>>, %arg11: memref<1x8xf32, #tpu.memory_space<vmem>>, %arg12: memref<1x8xf32, #tpu.memory_space<vmem>>, %arg13: memref<8x15xf32, #tpu.memory_space<vmem>>, %arg14: memref<1x64x8xf32, #tpu.memory_space<vmem>>, %arg15: memref<18x32x8xf32, #tpu.memory_space<vmem>>) attributes {dimension_semantics = [#tpu.dimension_semantics<parallel>], iteration_bounds = array<i64: 2>, scalar_prefetch = 0 : i64, scratch_operands = 1 : i64, tpu.core_type = #tpu.core_type<tc>, window_params = [{transform_indices = @transform_0, window_bounds = array<i64: 1, 256, 4>}, {pipeline_mode = #tpu.pipeline_mode<synchronous>, transform_indices = @transform_1, window_bounds = array<i64: 4, 8>}, {pipeline_mode = #tpu.pipeline_mode<synchronous>, transform_indices = @transform_2, window_bounds = array<i64: 1, 8>}, {pipeline_mode = #tpu.pipeline_mode<synchronous>, transform_indices = @transform_3, window_bounds = array<i64: 1, 8>}, {pipeline_mode = #tpu.pipeline_mode<synchronous>, transform_indices = @transform_4, window_bounds = array<i64: 1, 8>}, {pipeline_mode = #tpu.pipeline_mode<synchronous>, transform_indices = @transform_5, window_bounds = array<i64: 9, 8>}, {pipeline_mode = #tpu.pipeline_mode<synchronous>, transform_indices = @transform_6, window_bounds = array<i64: 1, 8>}, {pipeline_mode = #tpu.pipeline_mode<synchronous>, transform_indices = @transform_7, window_bounds = array<i64: 1, 8>}, {pipeline_mode = #tpu.pipeline_mode<synchronous>, transform_indices = @transform_8, window_bounds = array<i64: 1, 8>}, {pipeline_mode = #tpu.pipeline_mode<synchronous>, transform_indices = @transform_9, window_bounds = array<i64: 8, 8>}, {pipeline_mode = #tpu.pipeline_mode<synchronous>, transform_indices = @transform_10, window_bounds = array<i64: 1, 8>}, {pipeline_mode = #tpu.pipeline_mode<synchronous>, transform_indices = @transform_11, window_bounds = array<i64: 1, 8>}, {pipeline_mode = #tpu.pipeline_mode<synchronous>, transform_indices = @transform_12, window_bounds = array<i64: 8, 15>}, {transform_indices = @transform_13, window_bounds = array<i64: 1, 64, 8>}]} {
    %c0 = arith.constant 0 : index
    %c0_0 = arith.constant 0 : index
    %0 = vector.load %arg3[%c0, %c0_0] : memref<1x8xf32, #tpu.memory_space<vmem>>, vector<1x8xf32>
    %c0_1 = arith.constant 0 : index
    %c0_2 = arith.constant 0 : index
    %1 = vector.load %arg4[%c0_1, %c0_2] : memref<1x8xf32, #tpu.memory_space<vmem>>, vector<1x8xf32>
    %c0_3 = arith.constant 0 : index
    %c0_4 = arith.constant 0 : index
    %2 = vector.load %arg5[%c0_3, %c0_4] : memref<1x8xf32, #tpu.memory_space<vmem>>, vector<1x8xf32>
    %c0_5 = arith.constant 0 : index
    %c0_6 = arith.constant 0 : index
    %3 = vector.load %arg6[%c0_5, %c0_6] : memref<9x8xf32, #tpu.memory_space<vmem>>, vector<9x8xf32>
    %4 = vector.extract_strided_slice %3 {offsets = [0, 0], sizes = [1, 8], strides = [1, 1]} : vector<9x8xf32> to vector<1x8xf32>
    %5 = vector.shape_cast %4 : vector<1x8xf32> to vector<1x1x8xf32>
    %6 = vector.extract_strided_slice %3 {offsets = [1, 0], sizes = [1, 8], strides = [1, 1]} : vector<9x8xf32> to vector<1x8xf32>
    %7 = vector.shape_cast %6 : vector<1x8xf32> to vector<1x1x8xf32>
    %8 = vector.extract_strided_slice %3 {offsets = [2, 0], sizes = [1, 8], strides = [1, 1]} : vector<9x8xf32> to vector<1x8xf32>
    %9 = vector.shape_cast %8 : vector<1x8xf32> to vector<1x1x8xf32>
    %10 = vector.extract_strided_slice %3 {offsets = [3, 0], sizes = [1, 8], strides = [1, 1]} : vector<9x8xf32> to vector<1x8xf32>
    %11 = vector.shape_cast %10 : vector<1x8xf32> to vector<1x1x8xf32>
    %12 = vector.extract_strided_slice %3 {offsets = [4, 0], sizes = [1, 8], strides = [1, 1]} : vector<9x8xf32> to vector<1x8xf32>
    %13 = vector.shape_cast %12 : vector<1x8xf32> to vector<1x1x8xf32>
    %14 = vector.extract_strided_slice %3 {offsets = [5, 0], sizes = [1, 8], strides = [1, 1]} : vector<9x8xf32> to vector<1x8xf32>
    %15 = vector.shape_cast %14 : vector<1x8xf32> to vector<1x1x8xf32>
    %16 = vector.extract_strided_slice %3 {offsets = [6, 0], sizes = [1, 8], strides = [1, 1]} : vector<9x8xf32> to vector<1x8xf32>
    %17 = vector.shape_cast %16 : vector<1x8xf32> to vector<1x1x8xf32>
    %18 = vector.extract_strided_slice %3 {offsets = [7, 0], sizes = [1, 8], strides = [1, 1]} : vector<9x8xf32> to vector<1x8xf32>
    %19 = vector.shape_cast %18 : vector<1x8xf32> to vector<1x1x8xf32>
    %20 = vector.extract_strided_slice %3 {offsets = [8, 0], sizes = [1, 8], strides = [1, 1]} : vector<9x8xf32> to vector<1x8xf32>
    %21 = vector.shape_cast %20 : vector<1x8xf32> to vector<1x1x8xf32>
    %c0_7 = arith.constant 0 : index
    %c0_8 = arith.constant 0 : index
    %22 = vector.load %arg7[%c0_7, %c0_8] : memref<1x8xf32, #tpu.memory_space<vmem>>, vector<1x8xf32>
    %23 = vector.shape_cast %22 : vector<1x8xf32> to vector<1x1x8xf32>
    %c0_9 = arith.constant 0 : index
    %c0_10 = arith.constant 0 : index
    %24 = vector.load %arg8[%c0_9, %c0_10] : memref<1x8xf32, #tpu.memory_space<vmem>>, vector<1x8xf32>
    %25 = vector.shape_cast %24 : vector<1x8xf32> to vector<1x1x8xf32>
    %c0_11 = arith.constant 0 : index
    %c0_12 = arith.constant 0 : index
    %26 = vector.load %arg9[%c0_11, %c0_12] : memref<1x8xf32, #tpu.memory_space<vmem>>, vector<1x8xf32>
    %27 = vector.shape_cast %26 : vector<1x8xf32> to vector<1x1x8xf32>
    %c0_13 = arith.constant 0 : index
    %c0_14 = arith.constant 0 : index
    %28 = vector.load %arg11[%c0_13, %c0_14] : memref<1x8xf32, #tpu.memory_space<vmem>>, vector<1x8xf32>
    %c0_15 = arith.constant 0 : index
    %c0_16 = arith.constant 0 : index
    %29 = vector.load %arg12[%c0_15, %c0_16] : memref<1x8xf32, #tpu.memory_space<vmem>>, vector<1x8xf32>
    %cst = arith.constant 0.000000e+00 : f32
    %30 = vector.broadcast %cst : f32 to vector<18x8x8xf32>
    %c0_17 = arith.constant 0 : index
    %c0_18 = arith.constant 0 : index
    %c0_19 = arith.constant 0 : index
    %31 = vector.load %arg15[%c0_17, %c0_18, %c0_19] : memref<18x32x8xf32, #tpu.memory_space<vmem>>, vector<18x8x8xf32>
    tpu.vector_store %arg15[%c0_17, %c0_18, %c0_19], %30 {strides = array<i32>} : memref<18x32x8xf32, #tpu.memory_space<vmem>>, vector<18x8x8xf32>,
    %cst_20 = arith.constant 0.000000e+00 : f32
    %32 = vector.broadcast %cst_20 : f32 to vector<18x8x8xf32>
    %c0_21 = arith.constant 0 : index
    %c24 = arith.constant 24 : index
    %c0_22 = arith.constant 0 : index
    %33 = vector.load %arg15[%c0_21, %c24, %c0_22] : memref<18x32x8xf32, #tpu.memory_space<vmem>>, vector<18x8x8xf32>
    tpu.vector_store %arg15[%c0_21, %c24, %c0_22], %32 {strides = array<i32>} : memref<18x32x8xf32, #tpu.memory_space<vmem>>, vector<18x8x8xf32>,
    %cst_23 = arith.constant 0.000000e+00 : f32
    %34 = vector.broadcast %cst_23 : f32 to vector<1x16x8xf32>
    %c0_24 = arith.constant 0 : index
    %c8 = arith.constant 8 : index
    %c0_25 = arith.constant 0 : index
    %35 = vector.load %arg15[%c0_24, %c8, %c0_25] : memref<18x32x8xf32, #tpu.memory_space<vmem>>, vector<1x16x8xf32>
    tpu.vector_store %arg15[%c0_24, %c8, %c0_25], %34 {strides = array<i32>} : memref<18x32x8xf32, #tpu.memory_space<vmem>>, vector<1x16x8xf32>,
    %cst_26 = arith.constant 0.000000e+00 : f32
    %36 = vector.broadcast %cst_26 : f32 to vector<1x16x8xf32>
    %c17 = arith.constant 17 : index
    %c8_27 = arith.constant 8 : index
    %c0_28 = arith.constant 0 : index
    %37 = vector.load %arg15[%c17, %c8_27, %c0_28] : memref<18x32x8xf32, #tpu.memory_space<vmem>>, vector<1x16x8xf32>
    tpu.vector_store %arg15[%c17, %c8_27, %c0_28], %36 {strides = array<i32>} : memref<18x32x8xf32, #tpu.memory_space<vmem>>, vector<1x16x8xf32>,
    %c0_29 = arith.constant 0 : index
    %c0_30 = arith.constant 0 : index
    %c0_31 = arith.constant 0 : index
    %38 = vector.load %arg1[%c0_29, %c0_30, %c0_31] : memref<1x256x4xf32, #tpu.memory_space<vmem>>, vector<1x256x4xf32>
    %39 = vector.shape_cast %38 : vector<1x256x4xf32> to vector<256x4xf32>
    %c0_32 = arith.constant 0 : index
    %c0_33 = arith.constant 0 : index
    %40 = vector.load %arg2[%c0_32, %c0_33] : memref<4x8xf32, #tpu.memory_space<vmem>>, vector<4x8xf32>
    %cst_34 = arith.constant dense<0.000000e+00> : vector<256x8xf32>
    %41 = tpu.matmul %39, %40, %cst_34 {dimension_numbers = #tpu.dot_dimension_numbers<[1], [0], [0], [1], [0, 0, 1, 1], [], []>} : vector<256x4xf32>, vector<4x8xf32>, vector<256x8xf32> -> vector<256x8xf32>
    %42 = vector.broadcast %0 : vector<1x8xf32> to vector<256x8xf32>
    %43 = arith.mulf %41, %42 : vector<256x8xf32>
    %44 = vector.broadcast %1 : vector<1x8xf32> to vector<256x8xf32>
    %45 = arith.addf %43, %44 : vector<256x8xf32>
    %cst_35 = arith.constant 0.000000e+00 : f32
    %46 = vector.broadcast %cst_35 : f32 to vector<256x8xf32>
    %47 = arith.cmpf ogt, %45, %46 : vector<256x8xf32>
    %48 = vector.broadcast %2 : vector<1x8xf32> to vector<256x8xf32>
    %49 = arith.mulf %48, %45 : vector<256x8xf32>
    %50 = arith.select %47, %45, %49 : vector<256x8xi1>, vector<256x8xf32>
    %51 = vector.shape_cast %50 : vector<256x8xf32> to vector<16x16x8xf32>
    %c1 = arith.constant 1 : index
    %c8_36 = arith.constant 8 : index
    %c0_37 = arith.constant 0 : index
    %52 = vector.load %arg15[%c1, %c8_36, %c0_37] : memref<18x32x8xf32, #tpu.memory_space<vmem>>, vector<16x16x8xf32>
    tpu.vector_store %arg15[%c1, %c8_36, %c0_37], %51 {strides = array<i32>} : memref<18x32x8xf32, #tpu.memory_space<vmem>>, vector<16x16x8xf32>,
    %cst_38 = arith.constant 0.000000e+00 : f32
    %53 = vector.broadcast %cst_38 : f32 to vector<8x15x8xf32>
    %c0_39 = arith.constant 0 : index
    %c7 = arith.constant 7 : index
    %c0_40 = arith.constant 0 : index
    %54 = vector.load %arg15[%c0_39, %c7, %c0_40] : memref<18x32x8xf32, #tpu.memory_space<vmem>>, vector<16x17x8xf32>
    %55 = vector.shape_cast %54 : vector<16x17x8xf32> to vector<8x2x17x8xf32>
    %56 = vector.extract_strided_slice %55 {offsets = [0, 0, 0, 0], sizes = [8, 1, 17, 8], strides = [1, 1, 1, 1]} : vector<8x2x17x8xf32> to vector<8x1x17x8xf32>
    %57 = vector.shape_cast %56 : vector<8x1x17x8xf32> to vector<8x17x8xf32>
    %58 = vector.extract_strided_slice %57 {offsets = [0, 0, 0], sizes = [8, 15, 8], strides = [1, 1, 1]} : vector<8x17x8xf32> to vector<8x15x8xf32>
    %59 = vector.broadcast %5 : vector<1x1x8xf32> to vector<8x15x8xf32>
    %60 = arith.mulf %58, %59 : vector<8x15x8xf32>
    %61 = arith.addf %53, %60 : vector<8x15x8xf32>
    %62 = vector.extract_strided_slice %57 {offsets = [0, 1, 0], sizes = [8, 15, 8], strides = [1, 1, 1]} : vector<8x17x8xf32> to vector<8x15x8xf32>
    %63 = vector.broadcast %7 : vector<1x1x8xf32> to vector<8x15x8xf32>
    %64 = arith.mulf %62, %63 : vector<8x15x8xf32>
    %65 = arith.addf %61, %64 : vector<8x15x8xf32>
    %66 = vector.extract_strided_slice %57 {offsets = [0, 2, 0], sizes = [8, 15, 8], strides = [1, 1, 1]} : vector<8x17x8xf32> to vector<8x15x8xf32>
    %67 = vector.broadcast %9 : vector<1x1x8xf32> to vector<8x15x8xf32>
    %68 = arith.mulf %66, %67 : vector<8x15x8xf32>
    %69 = arith.addf %65, %68 : vector<8x15x8xf32>
    %c1_41 = arith.constant 1 : index
    %c7_42 = arith.constant 7 : index
    %c0_43 = arith.constant 0 : index
    %70 = vector.load %arg15[%c1_41, %c7_42, %c0_43] : memref<18x32x8xf32, #tpu.memory_space<vmem>>, vector<16x17x8xf32>
    %71 = vector.shape_cast %70 : vector<16x17x8xf32> to vector<8x2x17x8xf32>
    %72 = vector.extract_strided_slice %71 {offsets = [0, 0, 0, 0], sizes = [8, 1, 17, 8], strides = [1, 1, 1, 1]} : vector<8x2x17x8xf32> to vector<8x1x17x8xf32>
    %73 = vector.shape_cast %72 : vector<8x1x17x8xf32> to vector<8x17x8xf32>
    %74 = vector.extract_strided_slice %73 {offsets = [0, 0, 0], sizes = [8, 15, 8], strides = [1, 1, 1]} : vector<8x17x8xf32> to vector<8x15x8xf32>
    %75 = vector.broadcast %11 : vector<1x1x8xf32> to vector<8x15x8xf32>
    %76 = arith.mulf %74, %75 : vector<8x15x8xf32>
    %77 = arith.addf %69, %76 : vector<8x15x8xf32>
    %78 = vector.extract_strided_slice %73 {offsets = [0, 1, 0], sizes = [8, 15, 8], strides = [1, 1, 1]} : vector<8x17x8xf32> to vector<8x15x8xf32>
    %79 = vector.broadcast %13 : vector<1x1x8xf32> to vector<8x15x8xf32>
    %80 = arith.mulf %78, %79 : vector<8x15x8xf32>
    %81 = arith.addf %77, %80 : vector<8x15x8xf32>
    %82 = vector.extract_strided_slice %73 {offsets = [0, 2, 0], sizes = [8, 15, 8], strides = [1, 1, 1]} : vector<8x17x8xf32> to vector<8x15x8xf32>
    %83 = vector.broadcast %15 : vector<1x1x8xf32> to vector<8x15x8xf32>
    %84 = arith.mulf %82, %83 : vector<8x15x8xf32>
    %85 = arith.addf %81, %84 : vector<8x15x8xf32>
    %c2 = arith.constant 2 : index
    %c7_44 = arith.constant 7 : index
    %c0_45 = arith.constant 0 : index
    %86 = vector.load %arg15[%c2, %c7_44, %c0_45] : memref<18x32x8xf32, #tpu.memory_space<vmem>>, vector<16x17x8xf32>
    %87 = vector.shape_cast %86 : vector<16x17x8xf32> to vector<8x2x17x8xf32>
    %88 = vector.extract_strided_slice %87 {offsets = [0, 0, 0, 0], sizes = [8, 1, 17, 8], strides = [1, 1, 1, 1]} : vector<8x2x17x8xf32> to vector<8x1x17x8xf32>
    %89 = vector.shape_cast %88 : vector<8x1x17x8xf32> to vector<8x17x8xf32>
    %90 = vector.extract_strided_slice %89 {offsets = [0, 0, 0], sizes = [8, 15, 8], strides = [1, 1, 1]} : vector<8x17x8xf32> to vector<8x15x8xf32>
    %91 = vector.broadcast %17 : vector<1x1x8xf32> to vector<8x15x8xf32>
    %92 = arith.mulf %90, %91 : vector<8x15x8xf32>
    %93 = arith.addf %85, %92 : vector<8x15x8xf32>
    %94 = vector.extract_strided_slice %89 {offsets = [0, 1, 0], sizes = [8, 15, 8], strides = [1, 1, 1]} : vector<8x17x8xf32> to vector<8x15x8xf32>
    %95 = vector.broadcast %19 : vector<1x1x8xf32> to vector<8x15x8xf32>
    %96 = arith.mulf %94, %95 : vector<8x15x8xf32>
    %97 = arith.addf %93, %96 : vector<8x15x8xf32>
    %98 = vector.extract_strided_slice %89 {offsets = [0, 2, 0], sizes = [8, 15, 8], strides = [1, 1, 1]} : vector<8x17x8xf32> to vector<8x15x8xf32>
    %99 = vector.broadcast %21 : vector<1x1x8xf32> to vector<8x15x8xf32>
    %100 = arith.mulf %98, %99 : vector<8x15x8xf32>
    %101 = arith.addf %97, %100 : vector<8x15x8xf32>
    %c0_46 = arith.constant 0 : index
    %c0_47 = arith.constant 0 : index
    %102 = vector.load %arg13[%c0_46, %c0_47] : memref<8x15xf32, #tpu.memory_space<vmem>>, vector<8x15xf32>
    %103 = vector.shape_cast %102 : vector<8x15xf32> to vector<1x8x15xf32>
    %104 = vector.shape_cast %103 : vector<1x8x15xf32> to vector<1x8x15xf32>
    %105 = vector.broadcast %104 : vector<1x8x15xf32> to vector<8x8x15xf32>
    "tpu.trace_start"() <{level = 10 : i32, message = "how,hwg->hog"}> : () -> ()
    %cst_48 = arith.constant dense<0.000000e+00> : vector<8x8x8xf32>
    %106 = tpu.matmul %105, %101, %cst_48 {dimension_numbers = #tpu.dot_dimension_numbers<[2], [1], [1], [2], [0, 0, 0, 1, 1, 2], [0], [0]>} : vector<8x8x15xf32>, vector<8x15x8xf32>, vector<8x8x8xf32> -> vector<8x8x8xf32>
    "tpu.trace_stop"() : () -> ()
    %107 = vector.broadcast %23 : vector<1x1x8xf32> to vector<8x8x8xf32>
    %108 = arith.mulf %106, %107 : vector<8x8x8xf32>
    %109 = vector.broadcast %25 : vector<1x1x8xf32> to vector<8x8x8xf32>
    %110 = arith.addf %108, %109 : vector<8x8x8xf32>
    %cst_49 = arith.constant 0.000000e+00 : f32
    %111 = vector.broadcast %cst_49 : f32 to vector<8x8x8xf32>
    %112 = arith.cmpf ogt, %110, %111 : vector<8x8x8xf32>
    %113 = vector.broadcast %27 : vector<1x1x8xf32> to vector<8x8x8xf32>
    %114 = arith.mulf %113, %110 : vector<8x8x8xf32>
    %115 = arith.select %112, %110, %114 : vector<8x8x8xi1>, vector<8x8x8xf32>
    %116 = vector.shape_cast %115 : vector<8x8x8xf32> to vector<64x8xf32>
    %c0_50 = arith.constant 0 : index
    %c0_51 = arith.constant 0 : index
    %117 = vector.load %arg10[%c0_50, %c0_51] : memref<8x8xf32, #tpu.memory_space<vmem>>, vector<8x8xf32>
    %cst_52 = arith.constant dense<0.000000e+00> : vector<64x8xf32>
    %118 = tpu.matmul %116, %117, %cst_52 {dimension_numbers = #tpu.dot_dimension_numbers<[1], [0], [0], [1], [0, 0, 1, 1], [], []>} : vector<64x8xf32>, vector<8x8xf32>, vector<64x8xf32> -> vector<64x8xf32>
    %119 = vector.broadcast %28 : vector<1x8xf32> to vector<64x8xf32>
    %120 = arith.mulf %118, %119 : vector<64x8xf32>
    %121 = vector.broadcast %29 : vector<1x8xf32> to vector<64x8xf32>
    %122 = arith.addf %120, %121 : vector<64x8xf32>
    %c0_53 = arith.constant 0 : index
    %c0_54 = arith.constant 0 : index
    %c0_55 = arith.constant 0 : index
    %123 = vector.load %arg14[%c0_53, %c0_54, %c0_55] : memref<1x64x8xf32, #tpu.memory_space<vmem>>, vector<1x64x8xf32>
    %124 = vector.shape_cast %123 : vector<1x64x8xf32> to vector<64x8xf32>
    %125 = vector.shape_cast %122 : vector<64x8xf32> to vector<1x64x8xf32>
    tpu.vector_store %arg14[%c0_53, %c0_54, %c0_55], %125 {strides = array<i32>} : memref<1x64x8xf32, #tpu.memory_space<vmem>>, vector<1x64x8xf32>,
    return
  }
  func.func @transform_0(%arg0: i32) -> (i32, i32, i32) {
    %c0_i32 = arith.constant 0 : i32
    %c0_i32_0 = arith.constant 0 : i32
    %c0_i32_1 = arith.constant 0 : i32
    return %arg0, %c0_i32, %c0_i32_0 : i32, i32, i32
  }
  func.func @transform_1(%arg0: i32) -> (i32, i32) {
    %c0_i32 = arith.constant 0 : i32
    %c0_i32_0 = arith.constant 0 : i32
    %c0_i32_1 = arith.constant 0 : i32
    return %c0_i32, %c0_i32_0 : i32, i32
  }
  func.func @transform_2(%arg0: i32) -> (i32, i32) {
    %c0_i32 = arith.constant 0 : i32
    %c0_i32_0 = arith.constant 0 : i32
    %c0_i32_1 = arith.constant 0 : i32
    return %c0_i32, %c0_i32_0 : i32, i32
  }
  func.func @transform_3(%arg0: i32) -> (i32, i32) {
    %c0_i32 = arith.constant 0 : i32
    %c0_i32_0 = arith.constant 0 : i32
    %c0_i32_1 = arith.constant 0 : i32
    return %c0_i32, %c0_i32_0 : i32, i32
  }
  func.func @transform_4(%arg0: i32) -> (i32, i32) {
    %c0_i32 = arith.constant 0 : i32
    %c0_i32_0 = arith.constant 0 : i32
    %c0_i32_1 = arith.constant 0 : i32
    return %c0_i32, %c0_i32_0 : i32, i32
  }
  func.func @transform_5(%arg0: i32) -> (i32, i32) {
    %c0_i32 = arith.constant 0 : i32
    %c0_i32_0 = arith.constant 0 : i32
    %c0_i32_1 = arith.constant 0 : i32
    return %c0_i32, %c0_i32_0 : i32, i32
  }
  func.func @transform_6(%arg0: i32) -> (i32, i32) {
    %c0_i32 = arith.constant 0 : i32
    %c0_i32_0 = arith.constant 0 : i32
    %c0_i32_1 = arith.constant 0 : i32
    return %c0_i32, %c0_i32_0 : i32, i32
  }
  func.func @transform_7(%arg0: i32) -> (i32, i32) {
    %c0_i32 = arith.constant 0 : i32
    %c0_i32_0 = arith.constant 0 : i32
    %c0_i32_1 = arith.constant 0 : i32
    return %c0_i32, %c0_i32_0 : i32, i32
  }
  func.func @transform_8(%arg0: i32) -> (i32, i32) {
    %c0_i32 = arith.constant 0 : i32
    %c0_i32_0 = arith.constant 0 : i32
    %c0_i32_1 = arith.constant 0 : i32
    return %c0_i32, %c0_i32_0 : i32, i32
  }
  func.func @transform_9(%arg0: i32) -> (i32, i32) {
    %c0_i32 = arith.constant 0 : i32
    %c0_i32_0 = arith.constant 0 : i32
    %c0_i32_1 = arith.constant 0 : i32
    return %c0_i32, %c0_i32_0 : i32, i32
  }
  func.func @transform_10(%arg0: i32) -> (i32, i32) {
    %c0_i32 = arith.constant 0 : i32
    %c0_i32_0 = arith.constant 0 : i32
    %c0_i32_1 = arith.constant 0 : i32
    return %c0_i32, %c0_i32_0 : i32, i32
  }
  func.func @transform_11(%arg0: i32) -> (i32, i32) {
    %c0_i32 = arith.constant 0 : i32
    %c0_i32_0 = arith.constant 0 : i32
    %c0_i32_1 = arith.constant 0 : i32
    return %c0_i32, %c0_i32_0 : i32, i32
  }
  func.func @transform_12(%arg0: i32) -> (i32, i32) {
    %c0_i32 = arith.constant 0 : i32
    %c0_i32_0 = arith.constant 0 : i32
    %c0_i32_1 = arith.constant 0 : i32
    return %c0_i32, %c0_i32_0 : i32, i32
  }
  func.func @transform_13(%arg0: i32) -> (i32, i32, i32) {
    %c0_i32 = arith.constant 0 : i32
    %c0_i32_0 = arith.constant 0 : i32
    %c0_i32_1 = arith.constant 0 : i32
    return %arg0, %c0_i32, %c0_i32_0 : i32, i32, i32
  }
}

</mosaic_0001>

<llo_original>
// kernel: tpu_custom_call.1
$region0: #{tpu_custom_call.1}
  #allocation0 [shape = 'u32[]', space=smem, size = 0x4, offset = 0x4, fixed_abs, tag = 'smem constant byte address 0x4 - core index']
  #allocation1 [shape = 'u32[144,128]{1,0:T(1,128)}', space=vmem, size = 0x12000, scoped, tag = 'internal scratch']
  #allocation2 [shape = 'f32[18,32,8]{2,1,0:T(8,128)}', space=vmem, size = 0x48000, scoped, tag = 'scratch operand']
  %s0 = inlined_call_operand.vmem [shape: f32[2,256,4], index: 0, kind: input, shape index: {}]
  %s1 = inlined_call_operand.vmem [shape: f32[4,8], index: 1, kind: input, shape index: {}]
  %s2 = inlined_call_operand.vmem [shape: f32[1,8], index: 2, kind: input, shape index: {}]
  %s3 = inlined_call_operand.vmem [shape: f32[1,8], index: 3, kind: input, shape index: {}]
  %s4 = inlined_call_operand.vmem [shape: f32[1,8], index: 4, kind: input, shape index: {}]
  %s5 = inlined_call_operand.vmem [shape: f32[9,8], index: 5, kind: input, shape index: {}]
  %s6 = inlined_call_operand.vmem [shape: f32[1,8], index: 6, kind: input, shape index: {}]
  %s7 = inlined_call_operand.vmem [shape: f32[1,8], index: 7, kind: input, shape index: {}]
  %s8 = inlined_call_operand.vmem [shape: f32[1,8], index: 8, kind: input, shape index: {}]
  %s9 = inlined_call_operand.vmem [shape: f32[8,8], index: 9, kind: input, shape index: {}]
  %s10 = inlined_call_operand.vmem [shape: f32[1,8], index: 10, kind: input, shape index: {}]
  %s11 = inlined_call_operand.vmem [shape: f32[1,8], index: 11, kind: input, shape index: {}]
  %s12 = inlined_call_operand.vmem [shape: f32[8,15], index: 12, kind: input, shape index: {}]
  %s13 = inlined_call_operand.vmem [shape: f32[2,64,8], index: 13, kind: output, shape index: {}]
  %s14 = sld [smem:[#allocation0]]
  $region85: #{tpu_custom_call.1} parent=0
    _
  %s16 = ssub.s32 1, %s14
  %s17 = scalar_select 0, %s16, %s14
  loop: start=0, step=1, limit=4
  $region2: #{tpu_custom_call.1} parent=0 // loop_pre_header
    _
  $region3: #{tpu_custom_call.1} parent=0 // loop_header
    %s19 = sphi 0, %s23
    %p20 = scmp.ge.s32.totalorder %s19, 4
    %s29 = sphi 0, %s31
    %s32 = sphi 0, %s29
    %s33 = sphi 0, %s32
    %s49 = sphi 0, %s33
    %s53 = sphi 0, %s53
    %s55 = sphi 0, %s53
    %s56 = sphi 0, %s55
    %s70 = sphi 0, %s56
    %s74 = sphi 0, %s74
    %s76 = sphi 0, %s74
    %s77 = sphi 0, %s76
    %s91 = sphi 0, %s77
    %s95 = sphi 0, %s95
    %s97 = sphi 0, %s95
    %s98 = sphi 0, %s97
    %s112 = sphi 0, %s98
    %s116 = sphi 0, %s116
    %s118 = sphi 0, %s116
    %s119 = sphi 0, %s118
    %s133 = sphi 0, %s119
    %s137 = sphi 0, %s137
    %s139 = sphi 0, %s137
    %s140 = sphi 0, %s139
    %s154 = sphi 0, %s140
    %s158 = sphi 0, %s158
    %s160 = sphi 0, %s158
    %s161 = sphi 0, %s160
    %s175 = sphi 0, %s161
    %s179 = sphi 0, %s179
    %s181 = sphi 0, %s179
    %s182 = sphi 0, %s181
    %s196 = sphi 0, %s182
    %s200 = sphi 0, %s200
    %s202 = sphi 0, %s200
    %s203 = sphi 0, %s202
    %s217 = sphi 0, %s203
    %s221 = sphi 0, %s221
    %s223 = sphi 0, %s221
    %s224 = sphi 0, %s223
    %s238 = sphi 0, %s224
    %s242 = sphi 0, %s242
    %s244 = sphi 0, %s242
    %s245 = sphi 0, %s244
    %s259 = sphi 0, %s245
    %s263 = sphi 0, %s263
    %s265 = sphi 0, %s263
    %s266 = sphi 0, %s265
    %s280 = sphi 0, %s266
    %s284 = sphi 0, %s284
    %s286 = sphi 0, %s284
    %s287 = sphi 0, %s286
    %s301 = sphi 0, %s287
    %s307 = sphi 0, %s309
    %s310 = sphi 0, %s307
    %s311 = sphi 0, %s310
    %s327 = sphi 0, %s311
  $region4: #{tpu_custom_call.1} parent=0 // loop_header_branch
    %22 = sbr.rel (%p20) target = $region8
  $region5: #{tpu_custom_call.1} parent=0 // loop_body
    %s24 = ssub.s32 %s19, 1
    %s25 = ssub.s32 %s19, 2
    %s26 = sadd.s32 %s19, 1
    %s27 = ssub.s32 %s19, %s26
    %p28 = scmp.eq.s32.totalorder %s27, 0
    %s30 = sadd.s32 %s29, 1
    %s31 = scalar_select %p28, %s29, %s30
    %p34 = pneg %p28
    %p35 = scmp.eq.s32.totalorder %s19, 1
    %p36 = por %p34, %p35
    %p37 = scmp.ne.s32.totalorder %s29, %s32
    %p38 = scmp.eq.s32.totalorder %s19, 0
    %p39 = por %p37, %p38
    %p40 = scmp.ne.s32.totalorder %s29, %s32
    %p41 = scmp.eq.s32.totalorder %s24, 1
    %p42 = por %p40, %p41
    %p43 = scmp.ne.s32.totalorder %s32, %s33
    %p44 = scmp.eq.s32.totalorder %s24, 0
    %p45 = por %p43, %p44
    %p46 = scmp.ne.s32.totalorder %s32, %s33
    %p47 = scmp.eq.s32.totalorder %s25, 1
    %p48 = por %p46, %p47
    %p50 = scmp.ne.s32.totalorder %s33, %s49
    %p51 = scmp.eq.s32.totalorder %s25, 0
    %p52 = por %p50, %p51
    %s54 = sadd.s32 %s53, 1
    %p57 = scmp.eq.s32.totalorder %s19, 1
    %p58 = scmp.ne.s32.totalorder %s53, %s55
    %p59 = scmp.eq.s32.totalorder %s19, 0
    %p60 = por %p58, %p59
    %p61 = scmp.ne.s32.totalorder %s53, %s55
    %p62 = scmp.eq.s32.totalorder %s24, 1
    %p63 = por %p61, %p62
    %p64 = scmp.ne.s32.totalorder %s55, %s56
    %p65 = scmp.eq.s32.totalorder %s24, 0
    %p66 = por %p64, %p65
    %p67 = scmp.ne.s32.totalorder %s55, %s56
    %p68 = scmp.eq.s32.totalorder %s25, 1
    %p69 = por %p67, %p68
    %p71 = scmp.ne.s32.totalorder %s56, %s70
    %p72 = scmp.eq.s32.totalorder %s25, 0
    %p73 = por %p71, %p72
    %s75 = sadd.s32 %s74, 1
    %p78 = scmp.eq.s32.totalorder %s19, 1
    %p79 = scmp.ne.s32.totalorder %s74, %s76
    %p80 = scmp.eq.s32.totalorder %s19, 0
    %p81 = por %p79, %p80
    %p82 = scmp.ne.s32.totalorder %s74, %s76
    %p83 = scmp.eq.s32.totalorder %s24, 1
    %p84 = por %p82, %p83
    %p85 = scmp.ne.s32.totalorder %s76, %s77
    %p86 = scmp.eq.s32.totalorder %s24, 0
    %p87 = por %p85, %p86
    %p88 = scmp.ne.s32.totalorder %s76, %s77
    %p89 = scmp.eq.s32.totalorder %s25, 1
    %p90 = por %p88, %p89
    %p92 = scmp.ne.s32.totalorder %s77, %s91
    %p93 = scmp.eq.s32.totalorder %s25, 0
    %p94 = por %p92, %p93
    %s96 = sadd.s32 %s95, 1
    %p99 = scmp.eq.s32.totalorder %s19, 1
    %p100 = scmp.ne.s32.totalorder %s95, %s97
    %p101 = scmp.eq.s32.totalorder %s19, 0
    %p102 = por %p100, %p101
    %p103 = scmp.ne.s32.totalorder %s95, %s97
    %p104 = scmp.eq.s32.totalorder %s24, 1
    %p105 = por %p103, %p104
    %p106 = scmp.ne.s32.totalorder %s97, %s98
    %p107 = scmp.eq.s32.totalorder %s24, 0
    %p108 = por %p106, %p107
    %p109 = scmp.ne.s32.totalorder %s97, %s98
    %p110 = scmp.eq.s32.totalorder %s25, 1
    %p111 = por %p109, %p110
    %p113 = scmp.ne.s32.totalorder %s98, %s112
    %p114 = scmp.eq.s32.totalorder %s25, 0
    %p115 = por %p113, %p114
    %s117 = sadd.s32 %s116, 1
    %p120 = scmp.eq.s32.totalorder %s19, 1
    %p121 = scmp.ne.s32.totalorder %s116, %s118
    %p122 = scmp.eq.s32.totalorder %s19, 0
    %p123 = por %p121, %p122
    %p124 = scmp.ne.s32.totalorder %s116, %s118
    %p125 = scmp.eq.s32.totalorder %s24, 1
    %p126 = por %p124, %p125
    %p127 = scmp.ne.s32.totalorder %s118, %s119
    %p128 = scmp.eq.s32.totalorder %s24, 0
    %p129 = por %p127, %p128
    %p130 = scmp.ne.s32.totalorder %s118, %s119
    %p131 = scmp.eq.s32.totalorder %s25, 1
    %p132 = por %p130, %p131
    %p134 = scmp.ne.s32.totalorder %s119, %s133
    %p135 = scmp.eq.s32.totalorder %s25, 0
    %p136 = por %p134, %p135
    %s138 = sadd.s32 %s137, 1
    %p141 = scmp.eq.s32.totalorder %s19, 1
    %p142 = scmp.ne.s32.totalorder %s137, %s139
    %p143 = scmp.eq.s32.totalorder %s19, 0
    %p144 = por %p142, %p143
    %p145 = scmp.ne.s32.totalorder %s137, %s139
    %p146 = scmp.eq.s32.totalorder %s24, 1
    %p147 = por %p145, %p146
    %p148 = scmp.ne.s32.totalorder %s139, %s140
    %p149 = scmp.eq.s32.totalorder %s24, 0
    %p150 = por %p148, %p149
    %p151 = scmp.ne.s32.totalorder %s139, %s140
    %p152 = scmp.eq.s32.totalorder %s25, 1
    %p153 = por %p151, %p152
    %p155 = scmp.ne.s32.totalorder %s140, %s154
    %p156 = scmp.eq.s32.totalorder %s25, 0
    %p157 = por %p155, %p156
    %s159 = sadd.s32 %s158, 1
    %p162 = scmp.eq.s32.totalorder %s19, 1
    %p163 = scmp.ne.s32.totalorder %s158, %s160
    %p164 = scmp.eq.s32.totalorder %s19, 0
    %p165 = por %p163, %p164
    %p166 = scmp.ne.s32.totalorder %s158, %s160
    %p167 = scmp.eq.s32.totalorder %s24, 1
    %p168 = por %p166, %p167
    %p169 = scmp.ne.s32.totalorder %s160, %s161
    %p170 = scmp.eq.s32.totalorder %s24, 0
    %p171 = por %p169, %p170
    %p172 = scmp.ne.s32.totalorder %s160, %s161
    %p173 = scmp.eq.s32.totalorder %s25, 1
    %p174 = por %p172, %p173
    %p176 = scmp.ne.s32.totalorder %s161, %s175
    %p177 = scmp.eq.s32.totalorder %s25, 0
    %p178 = por %p176, %p177
    %s180 = sadd.s32 %s179, 1
    %p183 = scmp.eq.s32.totalorder %s19, 1
    %p184 = scmp.ne.s32.totalorder %s179, %s181
    %p185 = scmp.eq.s32.totalorder %s19, 0
    %p186 = por %p184, %p185
    %p187 = scmp.ne.s32.totalorder %s179, %s181
    %p188 = scmp.eq.s32.totalorder %s24, 1
    %p189 = por %p187, %p188
    %p190 = scmp.ne.s32.totalorder %s181, %s182
    %p191 = scmp.eq.s32.totalorder %s24, 0
    %p192 = por %p190, %p191
    %p193 = scmp.ne.s32.totalorder %s181, %s182
    %p194 = scmp.eq.s32.totalorder %s25, 1
    %p195 = por %p193, %p194
    %p197 = scmp.ne.s32.totalorder %s182, %s196
    %p198 = scmp.eq.s32.totalorder %s25, 0
    %p199 = por %p197, %p198
    %s201 = sadd.s32 %s200, 1
    %p204 = scmp.eq.s32.totalorder %s19, 1
    %p205 = scmp.ne.s32.totalorder %s200, %s202
    %p206 = scmp.eq.s32.totalorder %s19, 0
    %p207 = por %p205, %p206
    %p208 = scmp.ne.s32.totalorder %s200, %s202
    %p209 = scmp.eq.s32.totalorder %s24, 1
    %p210 = por %p208, %p209
    %p211 = scmp.ne.s32.totalorder %s202, %s203
    %p212 = scmp.eq.s32.totalorder %s24, 0
    %p213 = por %p211, %p212
    %p214 = scmp.ne.s32.totalorder %s202, %s203
    %p215 = scmp.eq.s32.totalorder %s25, 1
    %p216 = por %p214, %p215
    %p218 = scmp.ne.s32.totalorder %s203, %s217
    %p219 = scmp.eq.s32.totalorder %s25, 0
    %p220 = por %p218, %p219
    %s222 = sadd.s32 %s221, 1
    %p225 = scmp.eq.s32.totalorder %s19, 1
    %p226 = scmp.ne.s32.totalorder %s221, %s223
    %p227 = scmp.eq.s32.totalorder %s19, 0
    %p228 = por %p226, %p227
    %p229 = scmp.ne.s32.totalorder %s221, %s223
    %p230 = scmp.eq.s32.totalorder %s24, 1
    %p231 = por %p229, %p230
    %p232 = scmp.ne.s32.totalorder %s223, %s224
    %p233 = scmp.eq.s32.totalorder %s24, 0
    %p234 = por %p232, %p233
    %p235 = scmp.ne.s32.totalorder %s223, %s224
    %p236 = scmp.eq.s32.totalorder %s25, 1
    %p237 = por %p235, %p236
    %p239 = scmp.ne.s32.totalorder %s224, %s238
    %p240 = scmp.eq.s32.totalorder %s25, 0
    %p241 = por %p239, %p240
    %s243 = sadd.s32 %s242, 1
    %p246 = scmp.eq.s32.totalorder %s19, 1
    %p247 = scmp.ne.s32.totalorder %s242, %s244
    %p248 = scmp.eq.s32.totalorder %s19, 0
    %p249 = por %p247, %p248
    %p250 = scmp.ne.s32.totalorder %s242, %s244
    %p251 = scmp.eq.s32.totalorder %s24, 1
    %p252 = por %p250, %p251
    %p253 = scmp.ne.s32.totalorder %s244, %s245
    %p254 = scmp.eq.s32.totalorder %s24, 0
    %p255 = por %p253, %p254
    %p256 = scmp.ne.s32.totalorder %s244, %s245
    %p257 = scmp.eq.s32.totalorder %s25, 1
    %p258 = por %p256, %p257
    %p260 = scmp.ne.s32.totalorder %s245, %s259
    %p261 = scmp.eq.s32.totalorder %s25, 0
    %p262 = por %p260, %p261
    %s264 = sadd.s32 %s263, 1
    %p267 = scmp.eq.s32.totalorder %s19, 1
    %p268 = scmp.ne.s32.totalorder %s263, %s265
    %p269 = scmp.eq.s32.totalorder %s19, 0
    %p270 = por %p268, %p269
    %p271 = scmp.ne.s32.totalorder %s263, %s265
    %p272 = scmp.eq.s32.totalorder %s24, 1
    %p273 = por %p271, %p272
    %p274 = scmp.ne.s32.totalorder %s265, %s266
    %p275 = scmp.eq.s32.totalorder %s24, 0
    %p276 = por %p274, %p275
    %p277 = scmp.ne.s32.totalorder %s265, %s266
    %p278 = scmp.eq.s32.totalorder %s25, 1
    %p279 = por %p277, %p278
    %p281 = scmp.ne.s32.totalorder %s266, %s280
    %p282 = scmp.eq.s32.totalorder %s25, 0
    %p283 = por %p281, %p282
    %s285 = sadd.s32 %s284, 1
    %p288 = scmp.eq.s32.totalorder %s19, 1
    %p289 = scmp.ne.s32.totalorder %s284, %s286
    %p290 = scmp.eq.s32.totalorder %s19, 0
    %p291 = por %p289, %p290
    %p292 = scmp.ne.s32.totalorder %s284, %s286
    %p293 = scmp.eq.s32.totalorder %s24, 1
    %p294 = por %p292, %p293
    %p295 = scmp.ne.s32.totalorder %s286, %s287
    %p296 = scmp.eq.s32.totalorder %s24, 0
    %p297 = por %p295, %p296
    %p298 = scmp.ne.s32.totalorder %s286, %s287
    %p299 = scmp.eq.s32.totalorder %s25, 1
    %p300 = por %p298, %p299
    %p302 = scmp.ne.s32.totalorder %s287, %s301
    %p303 = scmp.eq.s32.totalorder %s25, 0
    %p304 = por %p302, %p303
    %s305 = ssub.s32 %s19, %s26
    %p306 = scmp.eq.s32.totalorder %s305, 0
    %s308 = sadd.s32 %s307, 1
    %s309 = scalar_select %p306, %s307, %s308
    %p312 = pneg %p306
    %p313 = scmp.eq.s32.totalorder %s19, 1
    %p314 = por %p312, %p313
    %p315 = scmp.ne.s32.totalorder %s307, %s310
    %p316 = scmp.eq.s32.totalorder %s19, 0
    %p317 = por %p315, %p316
    %p318 = scmp.ne.s32.totalorder %s307, %s310
    %p319 = scmp.eq.s32.totalorder %s24, 1
    %p320 = por %p318, %p319
    %p321 = scmp.ne.s32.totalorder %s310, %s311
    %p322 = scmp.eq.s32.totalorder %s24, 0
    %p323 = por %p321, %p322
    %p324 = scmp.ne.s32.totalorder %s310, %s311
    %p325 = scmp.eq.s32.totalorder %s25, 1
    %p326 = por %p324, %p325
    %p328 = scmp.ne.s32.totalorder %s311, %s327
    %p329 = scmp.eq.s32.totalorder %s25, 0
    %p330 = por %p328, %p329
    %p331 = scmp.le.s32.totalorder 1, %s19
    %p332 = scmp.lt.s32.totalorder %s19, 3
    %p333 = pnand %p331, %p332
    %p334 = pneg %p333
    // Predicated region
    $region9: #{tpu_custom_call.1} parent=5 // pred_check
      _
    $region10: #{tpu_custom_call.1} parent=5 // pred_check_branch
      %336 = sbr.rel (%p333) target = $region12
    $region11: #{tpu_custom_call.1} parent=5 // pred_region
      %s337 = ssub.s32 %s19, 1
      // Predicated region
      $region13: #{tpu_custom_call.1} parent=11 // pred_check
        %p338 = pneg %p66
      $region14: #{tpu_custom_call.1} parent=11 // pred_check_branch
        %340 = sbr.rel (%p338) target = $region16
      $region15: #{tpu_custom_call.1} parent=11 // pred_region
        _
      $region16: #{tpu_custom_call.1} parent=11 // pred_fallthru
        _
      // Predicated region
      $region17: #{tpu_custom_call.1} parent=11 // pred_check
        %p341 = pneg %p87
      $region18: #{tpu_custom_call.1} parent=11 // pred_check_branch
        %343 = sbr.rel (%p341) target = $region20
      $region19: #{tpu_custom_call.1} parent=11 // pred_region
        _
      $region20: #{tpu_custom_call.1} parent=11 // pred_fallthru
        _
      // Predicated region
      $region21: #{tpu_custom_call.1} parent=11 // pred_check
        %p344 = pneg %p108
      $region22: #{tpu_custom_call.1} parent=11 // pred_check_branch
        %346 = sbr.rel (%p344) target = $region24
      $region23: #{tpu_custom_call.1} parent=11 // pred_region
        _
      $region24: #{tpu_custom_call.1} parent=11 // pred_fallthru
        _
      // Predicated region
      $region25: #{tpu_custom_call.1} parent=11 // pred_check
        %p347 = pneg %p129
      $region26: #{tpu_custom_call.1} parent=11 // pred_check_branch
        %349 = sbr.rel (%p347) target = $region28
      $region27: #{tpu_custom_call.1} parent=11 // pred_region
        _
      $region28: #{tpu_custom_call.1} parent=11 // pred_fallthru
        _
      // Predicated region
      $region29: #{tpu_custom_call.1} parent=11 // pred_check
        %p350 = pneg %p150
      $region30: #{tpu_custom_call.1} parent=11 // pred_check_branch
        %352 = sbr.rel (%p350) target = $region32
      $region31: #{tpu_custom_call.1} parent=11 // pred_region
        _
      $region32: #{tpu_custom_call.1} parent=11 // pred_fallthru
        _
      // Predicated region
      $region33: #{tpu_custom_call.1} parent=11 // pred_check
        %p353 = pneg %p171
      $region34: #{tpu_custom_call.1} parent=11 // pred_check_branch
        %355 = sbr.rel (%p353) target = $region36
      $region35: #{tpu_custom_call.1} parent=11 // pred_region
        _
      $region36: #{tpu_custom_call.1} parent=11 // pred_fallthru
        _
      // Predicated region
      $region37: #{tpu_custom_call.1} parent=11 // pred_check
        %p356 = pneg %p192
      $region38: #{tpu_custom_call.1} parent=11 // pred_check_branch
        %358 = sbr.rel (%p356) target = $region40
      $region39: #{tpu_custom_call.1} parent=11 // pred_region
        _
      $region40: #{tpu_custom_call.1} parent=11 // pred_fallthru
        _
      // Predicated region
      $region41: #{tpu_custom_call.1} parent=11 // pred_check
        %p359 = pneg %p213
      $region42: #{tpu_custom_call.1} parent=11 // pred_check_branch
        %361 = sbr.rel (%p359) target = $region44
      $region43: #{tpu_custom_call.1} parent=11 // pred_region
        _
      $region44: #{tpu_custom_call.1} parent=11 // pred_fallthru
        _
      // Predicated region
      $region45: #{tpu_custom_call.1} parent=11 // pred_check
        %p362 = pneg %p234
      $region46: #{tpu_custom_call.1} parent=11 // pred_check_branch
        %364 = sbr.rel (%p362) target = $region48
      $region47: #{tpu_custom_call.1} parent=11 // pred_region
        _
      $region48: #{tpu_custom_call.1} parent=11 // pred_fallthru
        _
      // Predicated region
      $region49: #{tpu_custom_call.1} parent=11 // pred_check
        %p365 = pneg %p255
      $region50: #{tpu_custom_call.1} parent=11 // pred_check_branch
        %367 = sbr.rel (%p365) target = $region52
      $region51: #{tpu_custom_call.1} parent=11 // pred_region
        _
      $region52: #{tpu_custom_call.1} parent=11 // pred_fallthru
        _
      // Predicated region
      $region53: #{tpu_custom_call.1} parent=11 // pred_check
        %p368 = pneg %p276
      $region54: #{tpu_custom_call.1} parent=11 // pred_check_branch
        %370 = sbr.rel (%p368) target = $region56
      $region55: #{tpu_custom_call.1} parent=11 // pred_region
        _
      $region56: #{tpu_custom_call.1} parent=11 // pred_fallthru
        _
      // Predicated region
      $region57: #{tpu_custom_call.1} parent=11 // pred_check
        %p371 = pneg %p297
      $region58: #{tpu_custom_call.1} parent=11 // pred_check_branch
        %373 = sbr.rel (%p371) target = $region60
      $region59: #{tpu_custom_call.1} parent=11 // pred_region
        _
      $region60: #{tpu_custom_call.1} parent=11 // pred_fallthru
        _
    $region12: #{tpu_custom_call.1} parent=5 // pred_fallthru
      _
    %p374 = scmp.lt.s32.totalorder %s19, 2
    // Predicated region
    $region61: #{tpu_custom_call.1} parent=5 // pred_check
      %p375 = pneg %p374
    $region62: #{tpu_custom_call.1} parent=5 // pred_check_branch
      %377 = sbr.rel (%p375) target = $region64
    $region63: #{tpu_custom_call.1} parent=5 // pred_region
      // Predicated region
      $region65: #{tpu_custom_call.1} parent=63 // pred_check
        %p378 = pneg %p39
      $region66: #{tpu_custom_call.1} parent=63 // pred_check_branch
        %380 = sbr.rel (%p378) target = $region68
      $region67: #{tpu_custom_call.1} parent=63 // pred_region
        %p381 = scmp.lt.s32.totalorder %s19, 1
        %s382 = scalar_select %p381, %s19, 1
        %s383 = smul.addr %s382, 32
        %s384 = smul.addr %s383, 8
        %s385 = scalar_lea.vmem %s0, %s384
      $region68: #{tpu_custom_call.1} parent=63 // pred_fallthru
        _
    $region64: #{tpu_custom_call.1} parent=5 // pred_fallthru
      _
    %p386 = scmp.le.s32.totalorder 1, %s19
    %p387 = scmp.lt.s32.totalorder %s19, 3
    %p388 = pnand %p386, %p387
    %p389 = pneg %p388
    // Predicated region
    $region69: #{tpu_custom_call.1} parent=5 // pred_check
      _
    $region70: #{tpu_custom_call.1} parent=5 // pred_check_branch
      %391 = sbr.rel (%p388) target = $region72
    $region71: #{tpu_custom_call.1} parent=5 // pred_region
      %s392 = ssub.s32 %s19, 1
      %p393 = scmp.lt.s32.totalorder %s24, 1
      %s394 = scalar_select %p393, %s24, 1
      %s395 = smul.addr %s394, 32
      %s396 = smul.addr %s395, 8
      %s397 = scalar_lea.vmem %s0, %s396
      %p398 = pneg %p45
      %p399 = pneg %p42
      %p400 = pneg %p66
      %p401 = pneg %p63
      %p402 = pneg %p87
      %p403 = pneg %p84
      %p404 = pneg %p108
      %p405 = pneg %p105
      %p406 = pneg %p129
      %p407 = pneg %p126
      %p408 = pneg %p150
      %p409 = pneg %p147
      %p410 = pneg %p171
      %p411 = pneg %p168
      %p412 = pneg %p192
      %p413 = pneg %p189
      %p414 = pneg %p213
      %p415 = pneg %p210
      %p416 = pneg %p234
      %p417 = pneg %p231
      %p418 = pneg %p255
      %p419 = pneg %p252
      %p420 = pneg %p276
      %p421 = pneg %p273
      %p422 = pneg %p297
      %p423 = pneg %p294
      %p424 = pneg %p323
      %p425 = pneg %p320
      %p426 = scmp.lt.s32.totalorder %s24, 1
      %s427 = scalar_select %p426, %s24, 1
      %s428 = smul.addr %s427, 8
      %s429 = smul.addr %s428, 8
      %s430 = scalar_lea.vmem %s13, %s429
      %p431 = scmp.lt.s32.totalorder %s24, 1
      %s432 = scalar_select %p431, %s24, 1
      %s433 = smul.addr %s432, 32
      %s434 = smul.addr %s433, 8
      %s435 = scalar_lea.vmem %s0, %s434
      %p436 = scmp.lt.s32.totalorder %s24, 1
      %s437 = scalar_select %p436, %s24, 1
      %s438 = smul.addr %s437, 8
      %s439 = smul.addr %s438, 8
      %s440 = scalar_lea.vmem %s13, %s439
      %v441 = vld [vmem:[%s2] sm:$0x1]
      %v442 = vld [vmem:[%s3] sm:$0x1]
      %v443 = vld [vmem:[%s4] sm:$0x1]
      %v444 = vld [vmem:[%s5] sm:$0xff]
      %v445 = vld [vmem:[%s5 + $0x8] sm:$0x1]
      %v446 = vld [vmem:[%s6] sm:$0x1]
      %v447 = vld [vmem:[%s7] sm:$0x1]
      %v448 = vld [vmem:[%s8] sm:$0x1]
      %v449 = vld [vmem:[%s10] sm:$0x1]
      %v450 = vld [vmem:[%s11] sm:$0x1]
      %vm451 = vcmask 64512
      %452 = vst.msk [vmem:[#allocation2] sm:$0xff] %vm451, 0.0
      %453 = vst.msk [vmem:[#allocation2 + $0x20] sm:$0xff] %vm451, 0.0
      %454 = vst.msk [vmem:[#allocation2 + $0x40] sm:$0xff] %vm451, 0.0
      %455 = vst.msk [vmem:[#allocation2 + $0x60] sm:$0xff] %vm451, 0.0
      %456 = vst.msk [vmem:[#allocation2 + $0x80] sm:$0xff] %vm451, 0.0
      %457 = vst.msk [vmem:[#allocation2 + $0xa0] sm:$0xff] %vm451, 0.0
      %458 = vst.msk [vmem:[#allocation2 + $0xc0] sm:$0xff] %vm451, 0.0
      %459 = vst.msk [vmem:[#allocation2 + $0xe0] sm:$0xff] %vm451, 0.0
      %460 = vst.msk [vmem:[#allocation2 + $0x100] sm:$0xff] %vm451, 0.0
      %461 = vst.msk [vmem:[#allocation2 + $0x120] sm:$0xff] %vm451, 0.0
      %462 = vst.msk [vmem:[#allocation2 + $0x140] sm:$0xff] %vm451, 0.0
      %463 = vst.msk [vmem:[#allocation2 + $0x160] sm:$0xff] %vm451, 0.0
      %464 = vst.msk [vmem:[#allocation2 + $0x180] sm:$0xff] %vm451, 0.0
      %465 = vst.msk [vmem:[#allocation2 + $0x1a0] sm:$0xff] %vm451, 0.0
      %466 = vst.msk [vmem:[#allocation2 + $0x1c0] sm:$0xff] %vm451, 0.0
      %467 = vst.msk [vmem:[#allocation2 + $0x1e0] sm:$0xff] %vm451, 0.0
      %468 = vst.msk [vmem:[#allocation2 + $0x200] sm:$0xff] %vm451, 0.0
      %469 = vst.msk [vmem:[#allocation2 + $0x220] sm:$0xff] %vm451, 0.0
      %470 = vst.msk [vmem:[#allocation2 + $0x18] sm:$0xff] %vm451, 0.0
      %471 = vst.msk [vmem:[#allocation2 + $0x38] sm:$0xff] %vm451, 0.0
      %472 = vst.msk [vmem:[#allocation2 + $0x58] sm:$0xff] %vm451, 0.0
      %473 = vst.msk [vmem:[#allocation2 + $0x78] sm:$0xff] %vm451, 0.0
      %474 = vst.msk [vmem:[#allocation2 + $0x98] sm:$0xff] %vm451, 0.0
      %475 = vst.msk [vmem:[#allocation2 + $0xb8] sm:$0xff] %vm451, 0.0
      %476 = vst.msk [vmem:[#allocation2 + $0xd8] sm:$0xff] %vm451, 0.0
      %477 = vst.msk [vmem:[#allocation2 + $0xf8] sm:$0xff] %vm451, 0.0
      %478 = vst.msk [vmem:[#allocation2 + $0x118] sm:$0xff] %vm451, 0.0
      %479 = vst.msk [vmem:[#allocation2 + $0x138] sm:$0xff] %vm451, 0.0
      %480 = vst.msk [vmem:[#allocation2 + $0x158] sm:$0xff] %vm451, 0.0
      %481 = vst.msk [vmem:[#allocation2 + $0x178] sm:$0xff] %vm451, 0.0
      %482 = vst.msk [vmem:[#allocation2 + $0x198] sm:$0xff] %vm451, 0.0
      %483 = vst.msk [vmem:[#allocation2 + $0x1b8] sm:$0xff] %vm451, 0.0
      %484 = vst.msk [vmem:[#allocation2 + $0x1d8] sm:$0xff] %vm451, 0.0
      %485 = vst.msk [vmem:[#allocation2 + $0x1f8] sm:$0xff] %vm451, 0.0
      %486 = vst.msk [vmem:[#allocation2 + $0x218] sm:$0xff] %vm451, 0.0
      %487 = vst.msk [vmem:[#allocation2 + $0x238] sm:$0xff] %vm451, 0.0
      %488 = vst.msk [vmem:[#allocation2 + $0x8] sm:$0xff] %vm451, 0.0
      %489 = vst.msk [vmem:[#allocation2 + $0x10] sm:$0xff] %vm451, 0.0
      %s490 = scalar_lea.vmem [#allocation2], 544
      %491 = vst.msk [vmem:[%s490 + $0x8] sm:$0xff] %vm451, 0.0
      %492 = vst.msk [vmem:[%s490 + $0x10] sm:$0xff] %vm451, 0.0
      %v493 = vld [vmem:[%s435] sm:$0xff]
      %v494 = vld [vmem:[%s435 + $0x8] sm:$0xff]
      %v495 = vld [vmem:[%s435 + $0x10] sm:$0xff]
      %v496 = vld [vmem:[%s435 + $0x18] sm:$0xff]
      %v497 = vld [vmem:[%s435 + $0x20] sm:$0xff]
      %v498 = vld [vmem:[%s435 + $0x28] sm:$0xff]
      %v499 = vld [vmem:[%s435 + $0x30] sm:$0xff]
      %v500 = vld [vmem:[%s435 + $0x38] sm:$0xff]
      %v501 = vld [vmem:[%s435 + $0x40] sm:$0xff]
      %v502 = vld [vmem:[%s435 + $0x48] sm:$0xff]
      %v503 = vld [vmem:[%s435 + $0x50] sm:$0xff]
      %v504 = vld [vmem:[%s435 + $0x58] sm:$0xff]
      %v505 = vld [vmem:[%s435 + $0x60] sm:$0xff]
      %v506 = vld [vmem:[%s435 + $0x68] sm:$0xff]
      %v507 = vld [vmem:[%s435 + $0x70] sm:$0xff]
      %v508 = vld [vmem:[%s435 + $0x78] sm:$0xff]
      %v509 = vld [vmem:[%s435 + $0x80] sm:$0xff]
      %v510 = vld [vmem:[%s435 + $0x88] sm:$0xff]
      %v511 = vld [vmem:[%s435 + $0x90] sm:$0xff]
      %v512 = vld [vmem:[%s435 + $0x98] sm:$0xff]
      %v513 = vld [vmem:[%s435 + $0xa0] sm:$0xff]
      %v514 = vld [vmem:[%s435 + $0xa8] sm:$0xff]
      %v515 = vld [vmem:[%s435 + $0xb0] sm:$0xff]
      %v516 = vld [vmem:[%s435 + $0xb8] sm:$0xff]
      %v517 = vld [vmem:[%s435 + $0xc0] sm:$0xff]
      %v518 = vld [vmem:[%s435 + $0xc8] sm:$0xff]
      %v519 = vld [vmem:[%s435 + $0xd0] sm:$0xff]
      %v520 = vld [vmem:[%s435 + $0xd8] sm:$0xff]
      %v521 = vld [vmem:[%s435 + $0xe0] sm:$0xff]
      %v522 = vld [vmem:[%s435 + $0xe8] sm:$0xff]
      %v523 = vld [vmem:[%s435 + $0xf0] sm:$0xff]
      %v524 = vld [vmem:[%s435 + $0xf8] sm:$0xff]
      %v525 = vld [vmem:[%s1] sm:$0xf]
      %vm526 = vcmask 31744
      %v528 = vsel %vm526, %v493, 0
      %v531 = vsel %vm526, %v494, 0
      %v534 = vsel %vm526, %v495, 0
      %v537 = vsel %vm526, %v496, 0
      %v540 = vsel %vm526, %v497, 0
      %v543 = vsel %vm526, %v498, 0
      %v546 = vsel %vm526, %v499, 0
      %v549 = vsel %vm526, %v500, 0
      %v552 = vsel %vm526, %v501, 0
      %v555 = vsel %vm526, %v502, 0
      %v558 = vsel %vm526, %v503, 0
      %v561 = vsel %vm526, %v504, 0
      %v564 = vsel %vm526, %v505, 0
      %v567 = vsel %vm526, %v506, 0
      %v570 = vsel %vm526, %v507, 0
      %v573 = vsel %vm526, %v508, 0
      %v576 = vsel %vm526, %v509, 0
      %v579 = vsel %vm526, %v510, 0
      %v582 = vsel %vm526, %v511, 0
      %v585 = vsel %vm526, %v512, 0
      %v588 = vsel %vm526, %v513, 0
      %v591 = vsel %vm526, %v514, 0
      %v594 = vsel %vm526, %v515, 0
      %v597 = vsel %vm526, %v516, 0
      %v600 = vsel %vm526, %v517, 0
      %v603 = vsel %vm526, %v518, 0
      %v606 = vsel %vm526, %v519, 0
      %v609 = vsel %vm526, %v520, 0
      %v612 = vsel %vm526, %v521, 0
      %v615 = vsel %vm526, %v522, 0
      %v618 = vsel %vm526, %v523, 0
      %v621 = vsel %vm526, %v524, 0
      %vm623 = vcmask 1043456
      %v625 = vsel %vm623, %v525, 0
      %627 = vmatprep.subr.mxu0 0.0
      %628 = vmatpush1.msra.mxu0 %v625
      %629 = vmatprep.subr.mxu0 0.0
      %630 = vmatpush1.msra.mxu0 0.0
      %631 = vmatprep.subr.mxu0 0.0
      %632 = vmatpush1.msra.mxu0 0.0
      %633 = vmatprep.subr.mxu0 0.0
      %634 = vmatpush1.msra.mxu0 0.0
      %635 = vmatprep.subr.mxu0 0.0
      %636 = vmatpush1.msra.mxu0 0.0
      %637 = vmatprep.subr.mxu0 0.0
      %638 = vmatpush1.msra.mxu0 0.0
      %639 = vmatprep.subr.mxu0 0.0
      %640 = vmatpush1.msra.mxu0 0.0
      %641 = vmatprep.subr.mxu0 0.0
      %642 = vmatpush1.msra.mxu0 0.0
      %643 = vmatprep.subr.mxu0 0.0
      %644 = vmatpush1.msra.mxu0 0.0
      %645 = vmatprep.subr.mxu0 0.0
      %646 = vmatpush1.msra.mxu0 0.0
      %647 = vmatprep.subr.mxu0 0.0
      %648 = vmatpush1.msra.mxu0 0.0
      %649 = vmatprep.subr.mxu0 0.0
      %650 = vmatpush1.msra.mxu0 0.0
      %651 = vmatprep.subr.mxu0 0.0
      %652 = vmatpush1.msra.mxu0 0.0
      %653 = vmatprep.subr.mxu0 0.0
      %654 = vmatpush1.msra.mxu0 0.0
      %655 = vmatprep.subr.mxu0 0.0
      %656 = vmatpush1.msra.mxu0 0.0
      %657 = vmatprep.subr.mxu0 0.0
      %658 = vmatpush1.msra.mxu0 0.0
      %659 = vmatprep.subr.mxu0 0.0
      %660 = vmatpush1.msra.mxu0 0.0
      %661 = vmatprep.subr.mxu0 0.0
      %662 = vmatpush1.msra.mxu0 0.0
      %663 = vmatprep.subr.mxu0 0.0
      %664 = vmatpush1.msra.mxu0 0.0
      %665 = vmatprep.subr.mxu0 0.0
      %666 = vmatpush1.msra.mxu0 0.0
      %667 = vmatprep.subr.mxu0 0.0
      %668 = vmatpush1.msra.mxu0 0.0
      %669 = vmatprep.subr.mxu0 0.0
      %670 = vmatpush1.msra.mxu0 0.0
      %671 = vmatprep.subr.mxu0 0.0
      %672 = vmatpush1.msra.mxu0 0.0
      %673 = vmatprep.subr.mxu0 0.0
      %674 = vmatpush1.msra.mxu0 0.0
      %675 = vmatprep.subr.mxu0 0.0
      %676 = vmatpush1.msra.mxu0 0.0
      %677 = vmatprep.subr.mxu0 0.0
      %678 = vmatpush1.msra.mxu0 0.0
      %679 = vmatprep.subr.mxu0 0.0
      %680 = vmatpush1.msra.mxu0 0.0
      %681 = vmatprep.subr.mxu0 0.0
      %682 = vmatpush1.msra.mxu0 0.0
      %683 = vmatprep.subr.mxu0 0.0
      %684 = vmatpush1.msra.mxu0 0.0
      %685 = vmatprep.subr.mxu0 0.0
      %686 = vmatpush1.msra.mxu0 0.0
      %687 = vmatprep.subr.mxu0 0.0
      %688 = vmatpush1.msra.mxu0 0.0
      %689 = vmatprep.subr.mxu0 0.0
      %690 = vmatpush1.msra.mxu0 0.0
      %691 = vmatprep.mubr.f32.mxu0 0.0
      %692 = vmatmul.mubr.f32.gmra.mrb[0].mxu0 %v528
      %v693 = vpop.f32.mrb[0].mxu0
      %v694 = vadd.f32 0.0, %v693
      %v695 = vpop.f32.mrb[0].mxu0
      %696 = vmatprep.mubr.f32.mxu0 0.0
      %697 = vmatmul.mubr.f32.gmra.mrb[0].mxu0 %v531
      %v698 = vpop.f32.mrb[0].mxu0
      %v699 = vadd.f32 0.0, %v698
      %v700 = vpop.f32.mrb[0].mxu0
      %701 = vmatprep.mubr.f32.mxu0 0.0
      %702 = vmatmul.mubr.f32.gmra.mrb[0].mxu0 %v534
      %v703 = vpop.f32.mrb[0].mxu0
      %v704 = vadd.f32 0.0, %v703
      %v705 = vpop.f32.mrb[0].mxu0
      %706 = vmatprep.mubr.f32.mxu0 0.0
      %707 = vmatmul.mubr.f32.gmra.mrb[0].mxu0 %v537
      %v708 = vpop.f32.mrb[0].mxu0
      %v709 = vadd.f32 0.0, %v708
      %v710 = vpop.f32.mrb[0].mxu0
      %711 = vmatprep.mubr.f32.mxu0 0.0
      %712 = vmatmul.mubr.f32.gmra.mrb[0].mxu0 %v540
      %v713 = vpop.f32.mrb[0].mxu0
      %v714 = vadd.f32 0.0, %v713
      %v715 = vpop.f32.mrb[0].mxu0
      %716 = vmatprep.mubr.f32.mxu0 0.0
      %717 = vmatmul.mubr.f32.gmra.mrb[0].mxu0 %v543
      %v718 = vpop.f32.mrb[0].mxu0
      %v719 = vadd.f32 0.0, %v718
      %v720 = vpop.f32.mrb[0].mxu0
      %721 = vmatprep.mubr.f32.mxu0 0.0
      %722 = vmatmul.mubr.f32.gmra.mrb[0].mxu0 %v546
      %v723 = vpop.f32.mrb[0].mxu0
      %v724 = vadd.f32 0.0, %v723
      %v725 = vpop.f32.mrb[0].mxu0
      %726 = vmatprep.mubr.f32.mxu0 0.0
      %727 = vmatmul.mubr.f32.gmra.mrb[0].mxu0 %v549
      %v728 = vpop.f32.mrb[0].mxu0
      %v729 = vadd.f32 0.0, %v728
      %v730 = vpop.f32.mrb[0].mxu0
      %731 = vmatprep.mubr.f32.mxu0 0.0
      %732 = vmatmul.mubr.f32.gmra.mrb[0].mxu0 %v552
      %v733 = vpop.f32.mrb[0].mxu0
      %v734 = vadd.f32 0.0, %v733
      %v735 = vpop.f32.mrb[0].mxu0
      %736 = vmatprep.mubr.f32.mxu0 0.0
      %737 = vmatmul.mubr.f32.gmra.mrb[0].mxu0 %v555
      %v738 = vpop.f32.mrb[0].mxu0
      %v739 = vadd.f32 0.0, %v738
      %v740 = vpop.f32.mrb[0].mxu0
      %741 = vmatprep.mubr.f32.mxu0 0.0
      %742 = vmatmul.mubr.f32.gmra.mrb[0].mxu0 %v558
      %v743 = vpop.f32.mrb[0].mxu0
      %v744 = vadd.f32 0.0, %v743
      %v745 = vpop.f32.mrb[0].mxu0
      %746 = vmatprep.mubr.f32.mxu0 0.0
      %747 = vmatmul.mubr.f32.gmra.mrb[0].mxu0 %v561
      %v748 = vpop.f32.mrb[0].mxu0
      %v749 = vadd.f32 0.0, %v748
      %v750 = vpop.f32.mrb[0].mxu0
      %751 = vmatprep.mubr.f32.mxu0 0.0
      %752 = vmatmul.mubr.f32.gmra.mrb[0].mxu0 %v564
      %v753 = vpop.f32.mrb[0].mxu0
      %v754 = vadd.f32 0.0, %v753
      %v755 = vpop.f32.mrb[0].mxu0
      %756 = vmatprep.mubr.f32.mxu0 0.0
      %757 = vmatmul.mubr.f32.gmra.mrb[0].mxu0 %v567
      %v758 = vpop.f32.mrb[0].mxu0
      %v759 = vadd.f32 0.0, %v758
      %v760 = vpop.f32.mrb[0].mxu0
      %761 = vmatprep.mubr.f32.mxu0 0.0
      %762 = vmatmul.mubr.f32.gmra.mrb[0].mxu0 %v570
      %v763 = vpop.f32.mrb[0].mxu0
      %v764 = vadd.f32 0.0, %v763
      %v765 = vpop.f32.mrb[0].mxu0
      %766 = vmatprep.mubr.f32.mxu0 0.0
      %767 = vmatmul.mubr.f32.gmra.mrb[0].mxu0 %v573
      %v768 = vpop.f32.mrb[0].mxu0
      %v769 = vadd.f32 0.0, %v768
      %v770 = vpop.f32.mrb[0].mxu0
      %771 = vmatprep.mubr.f32.mxu0 0.0
      %772 = vmatmul.mubr.f32.gmra.mrb[0].mxu0 %v576
      %v773 = vpop.f32.mrb[0].mxu0
      %v774 = vadd.f32 0.0, %v773
      %v775 = vpop.f32.mrb[0].mxu0
      %776 = vmatprep.mubr.f32.mxu0 0.0
      %777 = vmatmul.mubr.f32.gmra.mrb[0].mxu0 %v579
      %v778 = vpop.f32.mrb[0].mxu0
      %v779 = vadd.f32 0.0, %v778
      %v780 = vpop.f32.mrb[0].mxu0
      %781 = vmatprep.mubr.f32.mxu0 0.0
      %782 = vmatmul.mubr.f32.gmra.mrb[0].mxu0 %v582
      %v783 = vpop.f32.mrb[0].mxu0
      %v784 = vadd.f32 0.0, %v783
      %v785 = vpop.f32.mrb[0].mxu0
      %786 = vmatprep.mubr.f32.mxu0 0.0
      %787 = vmatmul.mubr.f32.gmra.mrb[0].mxu0 %v585
      %v788 = vpop.f32.mrb[0].mxu0
      %v789 = vadd.f32 0.0, %v788
      %v790 = vpop.f32.mrb[0].mxu0
      %791 = vmatprep.mubr.f32.mxu0 0.0
      %792 = vmatmul.mubr.f32.gmra.mrb[0].mxu0 %v588
      %v793 = vpop.f32.mrb[0].mxu0
      %v794 = vadd.f32 0.0, %v793
      %v795 = vpop.f32.mrb[0].mxu0
      %796 = vmatprep.mubr.f32.mxu0 0.0
      %797 = vmatmul.mubr.f32.gmra.mrb[0].mxu0 %v591
      %v798 = vpop.f32.mrb[0].mxu0
      %v799 = vadd.f32 0.0, %v798
      %v800 = vpop.f32.mrb[0].mxu0
      %801 = vmatprep.mubr.f32.mxu0 0.0
      %802 = vmatmul.mubr.f32.gmra.mrb[0].mxu0 %v594
      %v803 = vpop.f32.mrb[0].mxu0
      %v804 = vadd.f32 0.0, %v803
      %v805 = vpop.f32.mrb[0].mxu0
      %806 = vmatprep.mubr.f32.mxu0 0.0
      %807 = vmatmul.mubr.f32.gmra.mrb[0].mxu0 %v597
      %v808 = vpop.f32.mrb[0].mxu0
      %v809 = vadd.f32 0.0, %v808
      %v810 = vpop.f32.mrb[0].mxu0
      %811 = vmatprep.mubr.f32.mxu0 0.0
      %812 = vmatmul.mubr.f32.gmra.mrb[0].mxu0 %v600
      %v813 = vpop.f32.mrb[0].mxu0
      %v814 = vadd.f32 0.0, %v813
      %v815 = vpop.f32.mrb[0].mxu0
      %816 = vmatprep.mubr.f32.mxu0 0.0
      %817 = vmatmul.mubr.f32.gmra.mrb[0].mxu0 %v603
      %v818 = vpop.f32.mrb[0].mxu0
      %v819 = vadd.f32 0.0, %v818
      %v820 = vpop.f32.mrb[0].mxu0
      %821 = vmatprep.mubr.f32.mxu0 0.0
      %822 = vmatmul.mubr.f32.gmra.mrb[0].mxu0 %v606
      %v823 = vpop.f32.mrb[0].mxu0
      %v824 = vadd.f32 0.0, %v823
      %v825 = vpop.f32.mrb[0].mxu0
      %826 = vmatprep.mubr.f32.mxu0 0.0
      %827 = vmatmul.mubr.f32.gmra.mrb[0].mxu0 %v609
      %v828 = vpop.f32.mrb[0].mxu0
      %v829 = vadd.f32 0.0, %v828
      %v830 = vpop.f32.mrb[0].mxu0
      %831 = vmatprep.mubr.f32.mxu0 0.0
      %832 = vmatmul.mubr.f32.gmra.mrb[0].mxu0 %v612
      %v833 = vpop.f32.mrb[0].mxu0
      %v834 = vadd.f32 0.0, %v833
      %v835 = vpop.f32.mrb[0].mxu0
      %836 = vmatprep.mubr.f32.mxu0 0.0
      %837 = vmatmul.mubr.f32.gmra.mrb[0].mxu0 %v615
      %v838 = vpop.f32.mrb[0].mxu0
      %v839 = vadd.f32 0.0, %v838
      %v840 = vpop.f32.mrb[0].mxu0
      %841 = vmatprep.mubr.f32.mxu0 0.0
      %842 = vmatmul.mubr.f32.gmra.mrb[0].mxu0 %v618
      %v843 = vpop.f32.mrb[0].mxu0
      %v844 = vadd.f32 0.0, %v843
      %v845 = vpop.f32.mrb[0].mxu0
      %846 = vmatprep.mubr.f32.mxu0 0.0
      %847 = vmatmul.mubr.f32.gmra.mrb[0].mxu0 %v621
      %v848 = vpop.f32.mrb[0].mxu0
      %v849 = vadd.f32 0.0, %v848
      %v850 = vpop.f32.mrb[0].mxu0
      %851 = vdwg.mxu0
      %v853 = vlaneseq
      %v854 = vshrl.u32 %v853, 7
      %v855 = vsub.s32 0, %v854
      %v856 = vrot.slane %v441, %v855
      %v858 = vmul.f32 %v694, %v856
      %v859 = vmul.f32 %v699, %v856
      %v860 = vmul.f32 %v704, %v856
      %v861 = vmul.f32 %v709, %v856
      %v862 = vmul.f32 %v714, %v856
      %v863 = vmul.f32 %v719, %v856
      %v864 = vmul.f32 %v724, %v856
      %v865 = vmul.f32 %v729, %v856
      %v866 = vmul.f32 %v734, %v856
      %v867 = vmul.f32 %v739, %v856
      %v868 = vmul.f32 %v744, %v856
      %v869 = vmul.f32 %v749, %v856
      %v870 = vmul.f32 %v754, %v856
      %v871 = vmul.f32 %v759, %v856
      %v872 = vmul.f32 %v764, %v856
      %v873 = vmul.f32 %v769, %v856
      %v874 = vmul.f32 %v774, %v856
      %v875 = vmul.f32 %v779, %v856
      %v876 = vmul.f32 %v784, %v856
      %v877 = vmul.f32 %v789, %v856
      %v878 = vmul.f32 %v794, %v856
      %v879 = vmul.f32 %v799, %v856
      %v880 = vmul.f32 %v804, %v856
      %v881 = vmul.f32 %v809, %v856
      %v882 = vmul.f32 %v814, %v856
      %v883 = vmul.f32 %v819, %v856
      %v884 = vmul.f32 %v824, %v856
      %v885 = vmul.f32 %v829, %v856
      %v886 = vmul.f32 %v834, %v856
      %v887 = vmul.f32 %v839, %v856
      %v888 = vmul.f32 %v844, %v856
      %v889 = vmul.f32 %v849, %v856
      %v891 = vlaneseq
      %v892 = vshrl.u32 %v891, 7
      %v893 = vsub.s32 0, %v892
      %v894 = vrot.slane %v442, %v893
      %v896 = vadd.f32 %v858, %v894
      %v897 = vadd.f32 %v859, %v894
      %v898 = vadd.f32 %v860, %v894
      %v899 = vadd.f32 %v861, %v894
      %v900 = vadd.f32 %v862, %v894
      %v901 = vadd.f32 %v863, %v894
      %v902 = vadd.f32 %v864, %v894
      %v903 = vadd.f32 %v865, %v894
      %v904 = vadd.f32 %v866, %v894
      %v905 = vadd.f32 %v867, %v894
      %v906 = vadd.f32 %v868, %v894
      %v907 = vadd.f32 %v869, %v894
      %v908 = vadd.f32 %v870, %v894
      %v909 = vadd.f32 %v871, %v894
      %v910 = vadd.f32 %v872, %v894
      %v911 = vadd.f32 %v873, %v894
      %v912 = vadd.f32 %v874, %v894
      %v913 = vadd.f32 %v875, %v894
      %v914 = vadd.f32 %v876, %v894
      %v915 = vadd.f32 %v877, %v894
      %v916 = vadd.f32 %v878, %v894
      %v917 = vadd.f32 %v879, %v894
      %v918 = vadd.f32 %v880, %v894
      %v919 = vadd.f32 %v881, %v894
      %v920 = vadd.f32 %v882, %v894
      %v921 = vadd.f32 %v883, %v894
      %v922 = vadd.f32 %v884, %v894
      %v923 = vadd.f32 %v885, %v894
      %v924 = vadd.f32 %v886, %v894
      %v925 = vadd.f32 %v887, %v894
      %v926 = vadd.f32 %v888, %v894
      %v927 = vadd.f32 %v889, %v894
      %vm928 = vcmp.gt.f32.partialorder %v896, 0.0
      %vm929 = vcmp.gt.f32.partialorder %v897, 0.0
      %vm930 = vcmp.gt.f32.partialorder %v898, 0.0
      %vm931 = vcmp.gt.f32.partialorder %v899, 0.0
      %vm932 = vcmp.gt.f32.partialorder %v900, 0.0
      %vm933 = vcmp.gt.f32.partialorder %v901, 0.0
      %vm934 = vcmp.gt.f32.partialorder %v902, 0.0
      %vm935 = vcmp.gt.f32.partialorder %v903, 0.0
      %vm936 = vcmp.gt.f32.partialorder %v904, 0.0
      %vm937 = vcmp.gt.f32.partialorder %v905, 0.0
      %vm938 = vcmp.gt.f32.partialorder %v906, 0.0
      %vm939 = vcmp.gt.f32.partialorder %v907, 0.0
      %vm940 = vcmp.gt.f32.partialorder %v908, 0.0
      %vm941 = vcmp.gt.f32.partialorder %v909, 0.0
      %vm942 = vcmp.gt.f32.partialorder %v910, 0.0
      %vm943 = vcmp.gt.f32.partialorder %v911, 0.0
      %vm944 = vcmp.gt.f32.partialorder %v912, 0.0
      %vm945 = vcmp.gt.f32.partialorder %v913, 0.0
      %vm946 = vcmp.gt.f32.partialorder %v914, 0.0
      %vm947 = vcmp.gt.f32.partialorder %v915, 0.0
      %vm948 = vcmp.gt.f32.partialorder %v916, 0.0
      %vm949 = vcmp.gt.f32.partialorder %v917, 0.0
      %vm950 = vcmp.gt.f32.partialorder %v918, 0.0
      %vm951 = vcmp.gt.f32.partialorder %v919, 0.0
      %vm952 = vcmp.gt.f32.partialorder %v920, 0.0
      %vm953 = vcmp.gt.f32.partialorder %v921, 0.0
      %vm954 = vcmp.gt.f32.partialorder %v922, 0.0
      %vm955 = vcmp.gt.f32.partialorder %v923, 0.0
      %vm956 = vcmp.gt.f32.partialorder %v924, 0.0
      %vm957 = vcmp.gt.f32.partialorder %v925, 0.0
      %vm958 = vcmp.gt.f32.partialorder %v926, 0.0
      %vm959 = vcmp.gt.f32.partialorder %v927, 0.0
      %v961 = vlaneseq
      %v962 = vshrl.u32 %v961, 7
      %v963 = vsub.s32 0, %v962
      %v964 = vrot.slane %v443, %v963
      %v966 = vmul.f32 %v964, %v896
      %v967 = vmul.f32 %v964, %v897
      %v968 = vmul.f32 %v964, %v898
      %v969 = vmul.f32 %v964, %v899
      %v970 = vmul.f32 %v964, %v900
      %v971 = vmul.f32 %v964, %v901
      %v972 = vmul.f32 %v964, %v902
      %v973 = vmul.f32 %v964, %v903
      %v974 = vmul.f32 %v964, %v904
      %v975 = vmul.f32 %v964, %v905
      %v976 = vmul.f32 %v964, %v906
      %v977 = vmul.f32 %v964, %v907
      %v978 = vmul.f32 %v964, %v908
      %v979 = vmul.f32 %v964, %v909
      %v980 = vmul.f32 %v964, %v910
      %v981 = vmul.f32 %v964, %v911
      %v982 = vmul.f32 %v964, %v912
      %v983 = vmul.f32 %v964, %v913
      %v984 = vmul.f32 %v964, %v914
      %v985 = vmul.f32 %v964, %v915
      %v986 = vmul.f32 %v964, %v916
      %v987 = vmul.f32 %v964, %v917
      %v988 = vmul.f32 %v964, %v918
      %v989 = vmul.f32 %v964, %v919
      %v990 = vmul.f32 %v964, %v920
      %v991 = vmul.f32 %v964, %v921
      %v992 = vmul.f32 %v964, %v922
      %v993 = vmul.f32 %v964, %v923
      %v994 = vmul.f32 %v964, %v924
      %v995 = vmul.f32 %v964, %v925
      %v996 = vmul.f32 %v964, %v926
      %v997 = vmul.f32 %v964, %v927
      %v998 = vsel %vm928, %v896, %v966
      %v999 = vsel %vm929, %v897, %v967
      %v1000 = vsel %vm930, %v898, %v968
      %v1001 = vsel %vm931, %v899, %v969
      %v1002 = vsel %vm932, %v900, %v970
      %v1003 = vsel %vm933, %v901, %v971
      %v1004 = vsel %vm934, %v902, %v972
      %v1005 = vsel %vm935, %v903, %v973
      %v1006 = vsel %vm936, %v904, %v974
      %v1007 = vsel %vm937, %v905, %v975
      %v1008 = vsel %vm938, %v906, %v976
      %v1009 = vsel %vm939, %v907, %v977
      %v1010 = vsel %vm940, %v908, %v978
      %v1011 = vsel %vm941, %v909, %v979
      %v1012 = vsel %vm942, %v910, %v980
      %v1013 = vsel %vm943, %v911, %v981
      %v1014 = vsel %vm944, %v912, %v982
      %v1015 = vsel %vm945, %v913, %v983
      %v1016 = vsel %vm946, %v914, %v984
      %v1017 = vsel %vm947, %v915, %v985
      %v1018 = vsel %vm948, %v916, %v986
      %v1019 = vsel %vm949, %v917, %v987
      %v1020 = vsel %vm950, %v918, %v988
      %v1021 = vsel %vm951, %v919, %v989
      %v1022 = vsel %vm952, %v920, %v990
      %v1023 = vsel %vm953, %v921, %v991
      %v1024 = vsel %vm954, %v922, %v992
      %v1025 = vsel %vm955, %v923, %v993
      %v1026 = vsel %vm956, %v924, %v994
      %v1027 = vsel %vm957, %v925, %v995
      %v1028 = vsel %vm958, %v926, %v996
      %v1029 = vsel %vm959, %v927, %v997
      %s1030 = scalar_lea.vmem [#allocation2], 32
      %1031 = vst.msk [vmem:[%s1030 + $0x8] sm:$0xff] %vm451, %v998
      %1032 = vst.msk [vmem:[%s1030 + $0x10] sm:$0xff] %vm451, %v999
      %1033 = vst.msk [vmem:[%s1030 + $0x28] sm:$0xff] %vm451, %v1000
      %1034 = vst.msk [vmem:[%s1030 + $0x30] sm:$0xff] %vm451, %v1001
      %1035 = vst.msk [vmem:[%s1030 + $0x48] sm:$0xff] %vm451, %v1002
      %1036 = vst.msk [vmem:[%s1030 + $0x50] sm:$0xff] %vm451, %v1003
      %1037 = vst.msk [vmem:[%s1030 + $0x68] sm:$0xff] %vm451, %v1004
      %1038 = vst.msk [vmem:[%s1030 + $0x70] sm:$0xff] %vm451, %v1005
      %1039 = vst.msk [vmem:[%s1030 + $0x88] sm:$0xff] %vm451, %v1006
      %1040 = vst.msk [vmem:[%s1030 + $0x90] sm:$0xff] %vm451, %v1007
      %1041 = vst.msk [vmem:[%s1030 + $0xa8] sm:$0xff] %vm451, %v1008
      %1042 = vst.msk [vmem:[%s1030 + $0xb0] sm:$0xff] %vm451, %v1009
      %1043 = vst.msk [vmem:[%s1030 + $0xc8] sm:$0xff] %vm451, %v1010
      %1044 = vst.msk [vmem:[%s1030 + $0xd0] sm:$0xff] %vm451, %v1011
      %1045 = vst.msk [vmem:[%s1030 + $0xe8] sm:$0xff] %vm451, %v1012
      %1046 = vst.msk [vmem:[%s1030 + $0xf0] sm:$0xff] %vm451, %v1013
      %1047 = vst.msk [vmem:[%s1030 + $0x108] sm:$0xff] %vm451, %v1014
      %1048 = vst.msk [vmem:[%s1030 + $0x110] sm:$0xff] %vm451, %v1015
      %1049 = vst.msk [vmem:[%s1030 + $0x128] sm:$0xff] %vm451, %v1016
      %1050 = vst.msk [vmem:[%s1030 + $0x130] sm:$0xff] %vm451, %v1017
      %1051 = vst.msk [vmem:[%s1030 + $0x148] sm:$0xff] %vm451, %v1018
      %1052 = vst.msk [vmem:[%s1030 + $0x150] sm:$0xff] %vm451, %v1019
      %1053 = vst.msk [vmem:[%s1030 + $0x168] sm:$0xff] %vm451, %v1020
      %1054 = vst.msk [vmem:[%s1030 + $0x170] sm:$0xff] %vm451, %v1021
      %1055 = vst.msk [vmem:[%s1030 + $0x188] sm:$0xff] %vm451, %v1022
      %1056 = vst.msk [vmem:[%s1030 + $0x190] sm:$0xff] %vm451, %v1023
      %1057 = vst.msk [vmem:[%s1030 + $0x1a8] sm:$0xff] %vm451, %v1024
      %1058 = vst.msk [vmem:[%s1030 + $0x1b0] sm:$0xff] %vm451, %v1025
      %1059 = vst.msk [vmem:[%s1030 + $0x1c8] sm:$0xff] %vm451, %v1026
      %1060 = vst.msk [vmem:[%s1030 + $0x1d0] sm:$0xff] %vm451, %v1027
      %1061 = vst.msk [vmem:[%s1030 + $0x1e8] sm:$0xff] %vm451, %v1028
      %1062 = vst.msk [vmem:[%s1030 + $0x1f0] sm:$0xff] %vm451, %v1029
      %v1063 = vld [vmem:[#allocation2 + $0x7] sm:$0xff]
      %v1064 = vld [vmem:[#allocation2 + $0xf] sm:$0xff]
      %v1065 = vld [vmem:[#allocation2 + $0x17] sm:$0x1]
      %v1066 = vld [vmem:[#allocation2 + $0x47] sm:$0xff]
      %v1067 = vld [vmem:[#allocation2 + $0x4f] sm:$0xff]
      %v1068 = vld [vmem:[#allocation2 + $0x57] sm:$0x1]
      %v1069 = vld [vmem:[#allocation2 + $0x87] sm:$0xff]
      %v1070 = vld [vmem:[#allocation2 + $0x8f] sm:$0xff]
      %v1071 = vld [vmem:[#allocation2 + $0x97] sm:$0x1]
      %v1072 = vld [vmem:[#allocation2 + $0xc7] sm:$0xff]
      %v1073 = vld [vmem:[#allocation2 + $0xcf] sm:$0xff]
      %v1074 = vld [vmem:[#allocation2 + $0xd7] sm:$0x1]
      %v1075 = vld [vmem:[#allocation2 + $0x107] sm:$0xff]
      %v1076 = vld [vmem:[#allocation2 + $0x10f] sm:$0xff]
      %v1077 = vld [vmem:[#allocation2 + $0x117] sm:$0x1]
      %v1078 = vld [vmem:[#allocation2 + $0x147] sm:$0xff]
      %v1079 = vld [vmem:[#allocation2 + $0x14f] sm:$0xff]
      %v1080 = vld [vmem:[#allocation2 + $0x157] sm:$0x1]
      %v1081 = vld [vmem:[#allocation2 + $0x187] sm:$0xff]
      %v1082 = vld [vmem:[#allocation2 + $0x18f] sm:$0xff]
      %v1083 = vld [vmem:[#allocation2 + $0x197] sm:$0x1]
      %v1084 = vld [vmem:[#allocation2 + $0x1c7] sm:$0xff]
      %v1085 = vld [vmem:[#allocation2 + $0x1cf] sm:$0xff]
      %v1086 = vld [vmem:[#allocation2 + $0x1d7] sm:$0x1]
      %v1087 = vlaneseq
      %v1088 = vshrl.u32 %v1087, 7
      %v1089 = vsub.s32 0, %v1088
      %v1090 = vrot.slane %v444, %v1089
      %v1091 = vmul.f32 %v1063, %v1090
      %v1092 = vmul.f32 %v1064, %v1090
      %v1093 = vmul.f32 %v1066, %v1090
      %v1094 = vmul.f32 %v1067, %v1090
      %v1095 = vmul.f32 %v1069, %v1090
      %v1096 = vmul.f32 %v1070, %v1090
      %v1097 = vmul.f32 %v1072, %v1090
      %v1098 = vmul.f32 %v1073, %v1090
      %v1099 = vmul.f32 %v1075, %v1090
      %v1100 = vmul.f32 %v1076, %v1090
      %v1101 = vmul.f32 %v1078, %v1090
      %v1102 = vmul.f32 %v1079, %v1090
      %v1103 = vmul.f32 %v1081, %v1090
      %v1104 = vmul.f32 %v1082, %v1090
      %v1105 = vmul.f32 %v1084, %v1090
      %v1106 = vmul.f32 %v1085, %v1090
      %v1107 = vadd.f32 %v1091, 0.0
      %v1108 = vadd.f32 %v1092, 0.0
      %v1109 = vadd.f32 %v1093, 0.0
      %v1110 = vadd.f32 %v1094, 0.0
      %v1111 = vadd.f32 %v1095, 0.0
      %v1112 = vadd.f32 %v1096, 0.0
      %v1113 = vadd.f32 %v1097, 0.0
      %v1114 = vadd.f32 %v1098, 0.0
      %v1115 = vadd.f32 %v1099, 0.0
      %v1116 = vadd.f32 %v1100, 0.0
      %v1117 = vadd.f32 %v1101, 0.0
      %v1118 = vadd.f32 %v1102, 0.0
      %v1119 = vadd.f32 %v1103, 0.0
      %v1120 = vadd.f32 %v1104, 0.0
      %v1121 = vadd.f32 %v1105, 0.0
      %v1122 = vadd.f32 %v1106, 0.0
      %v1123 = vlaneseq
      %v1124 = vshrl.u32 %v1123, 7
      %v1125 = vsub.s32 1, %v1124
      %v1126 = vrot.slane %v444, %v1125
      %v1127 = vmul.f32 %v1063, %v1126
      %v1128 = vmul.f32 %v1064, %v1126
      %v1129 = vmul.f32 %v1066, %v1126
      %v1130 = vmul.f32 %v1067, %v1126
      %v1131 = vmul.f32 %v1069, %v1126
      %v1132 = vmul.f32 %v1070, %v1126
      %v1133 = vmul.f32 %v1072, %v1126
      %v1134 = vmul.f32 %v1073, %v1126
      %v1135 = vmul.f32 %v1075, %v1126
      %v1136 = vmul.f32 %v1076, %v1126
      %v1137 = vmul.f32 %v1078, %v1126
      %v1138 = vmul.f32 %v1079, %v1126
      %v1139 = vmul.f32 %v1081, %v1126
      %v1140 = vmul.f32 %v1082, %v1126
      %v1141 = vmul.f32 %v1084, %v1126
      %v1142 = vmul.f32 %v1085, %v1126
      %vm1159 = vcmask 1046528
      %v1160 = vrot.slane %v1127, 1
      %v1161 = vrot.slane %v1128, 1
      %v1162 = vsel %vm1159, %v1160, %v1161
      %v1163 = vrot.slane %v1129, 1
      %v1164 = vrot.slane %v1130, 1
      %v1165 = vsel %vm1159, %v1163, %v1164
      %v1166 = vrot.slane %v1131, 1
      %v1167 = vrot.slane %v1132, 1
      %v1168 = vsel %vm1159, %v1166, %v1167
      %v1169 = vrot.slane %v1133, 1
      %v1170 = vrot.slane %v1134, 1
      %v1171 = vsel %vm1159, %v1169, %v1170
      %v1172 = vrot.slane %v1135, 1
      %v1173 = vrot.slane %v1136, 1
      %v1174 = vsel %vm1159, %v1172, %v1173
      %v1175 = vrot.slane %v1137, 1
      %v1176 = vrot.slane %v1138, 1
      %v1177 = vsel %vm1159, %v1175, %v1176
      %v1178 = vrot.slane %v1139, 1
      %v1179 = vrot.slane %v1140, 1
      %v1180 = vsel %vm1159, %v1178, %v1179
      %v1181 = vrot.slane %v1141, 1
      %v1182 = vrot.slane %v1142, 1
      %v1183 = vsel %vm1159, %v1181, %v1182
      %v1200 = vadd.f32 %v1107, %v1162
      %v1201 = vadd.f32 %v1108, %v1161
      %v1202 = vadd.f32 %v1109, %v1165
      %v1203 = vadd.f32 %v1110, %v1164
      %v1204 = vadd.f32 %v1111, %v1168
      %v1205 = vadd.f32 %v1112, %v1167
      %v1206 = vadd.f32 %v1113, %v1171
      %v1207 = vadd.f32 %v1114, %v1170
      %v1208 = vadd.f32 %v1115, %v1174
      %v1209 = vadd.f32 %v1116, %v1173
      %v1210 = vadd.f32 %v1117, %v1177
      %v1211 = vadd.f32 %v1118, %v1176
      %v1212 = vadd.f32 %v1119, %v1180
      %v1213 = vadd.f32 %v1120, %v1179
      %v1214 = vadd.f32 %v1121, %v1183
      %v1215 = vadd.f32 %v1122, %v1182
      %v1216 = vlaneseq
      %v1217 = vshrl.u32 %v1216, 7
      %v1218 = vsub.s32 2, %v1217
      %v1219 = vrot.slane %v444, %v1218
      %v1220 = vmul.f32 %v1063, %v1219
      %v1221 = vmul.f32 %v1064, %v1219
      %v1222 = vmul.f32 %v1065, %v1219
      %v1223 = vmul.f32 %v1066, %v1219
      %v1224 = vmul.f32 %v1067, %v1219
      %v1225 = vmul.f32 %v1068, %v1219
      %v1226 = vmul.f32 %v1069, %v1219
      %v1227 = vmul.f32 %v1070, %v1219
      %v1228 = vmul.f32 %v1071, %v1219
      %v1229 = vmul.f32 %v1072, %v1219
      %v1230 = vmul.f32 %v1073, %v1219
      %v1231 = vmul.f32 %v1074, %v1219
      %v1232 = vmul.f32 %v1075, %v1219
      %v1233 = vmul.f32 %v1076, %v1219
      %v1234 = vmul.f32 %v1077, %v1219
      %v1235 = vmul.f32 %v1078, %v1219
      %v1236 = vmul.f32 %v1079, %v1219
      %v1237 = vmul.f32 %v1080, %v1219
      %v1238 = vmul.f32 %v1081, %v1219
      %v1239 = vmul.f32 %v1082, %v1219
      %v1240 = vmul.f32 %v1083, %v1219
      %v1241 = vmul.f32 %v1084, %v1219
      %v1242 = vmul.f32 %v1085, %v1219
      %v1243 = vmul.f32 %v1086, %v1219
      %vm1268 = vcmask 1045504
      %v1269 = vrot.slane %v1220, 2
      %v1270 = vrot.slane %v1221, 2
      %v1271 = vsel %vm1268, %v1269, %v1270
      %v1272 = vrot.slane %v1222, 2
      %v1273 = vsel %vm1268, %v1270, %v1272
      %v1274 = vrot.slane %v1223, 2
      %v1275 = vrot.slane %v1224, 2
      %v1276 = vsel %vm1268, %v1274, %v1275
      %v1277 = vrot.slane %v1225, 2
      %v1278 = vsel %vm1268, %v1275, %v1277
      %v1279 = vrot.slane %v1226, 2
      %v1280 = vrot.slane %v1227, 2
      %v1281 = vsel %vm1268, %v1279, %v1280
      %v1282 = vrot.slane %v1228, 2
      %v1283 = vsel %vm1268, %v1280, %v1282
      %v1284 = vrot.slane %v1229, 2
      %v1285 = vrot.slane %v1230, 2
      %v1286 = vsel %vm1268, %v1284, %v1285
      %v1287 = vrot.slane %v1231, 2
      %v1288 = vsel %vm1268, %v1285, %v1287
      %v1289 = vrot.slane %v1232, 2
      %v1290 = vrot.slane %v1233, 2
      %v1291 = vsel %vm1268, %v1289, %v1290
      %v1292 = vrot.slane %v1234, 2
      %v1293 = vsel %vm1268, %v1290, %v1292
      %v1294 = vrot.slane %v1235, 2
      %v1295 = vrot.slane %v1236, 2
      %v1296 = vsel %vm1268, %v1294, %v1295
      %v1297 = vrot.slane %v1237, 2
      %v1298 = vsel %vm1268, %v1295, %v1297
      %v1299 = vrot.slane %v1238, 2
      %v1300 = vrot.slane %v1239, 2
      %v1301 = vsel %vm1268, %v1299, %v1300
      %v1302 = vrot.slane %v1240, 2
      %v1303 = vsel %vm1268, %v1300, %v1302
      %v1304 = vrot.slane %v1241, 2
      %v1305 = vrot.slane %v1242, 2
      %v1306 = vsel %vm1268, %v1304, %v1305
      %v1307 = vrot.slane %v1243, 2
      %v1308 = vsel %vm1268, %v1305, %v1307
      %v1325 = vadd.f32 %v1200, %v1271
      %v1326 = vadd.f32 %v1201, %v1273
      %v1327 = vadd.f32 %v1202, %v1276
      %v1328 = vadd.f32 %v1203, %v1278
      %v1329 = vadd.f32 %v1204, %v1281
      %v1330 = vadd.f32 %v1205, %v1283
      %v1331 = vadd.f32 %v1206, %v1286
      %v1332 = vadd.f32 %v1207, %v1288
      %v1333 = vadd.f32 %v1208, %v1291
      %v1334 = vadd.f32 %v1209, %v1293
      %v1335 = vadd.f32 %v1210, %v1296
      %v1336 = vadd.f32 %v1211, %v1298
      %v1337 = vadd.f32 %v1212, %v1301
      %v1338 = vadd.f32 %v1213, %v1303
      %v1339 = vadd.f32 %v1214, %v1306
      %v1340 = vadd.f32 %v1215, %v1308
      %v1341 = vld [vmem:[%s1030 + $0x7] sm:$0xff]
      %v1342 = vld [vmem:[%s1030 + $0xf] sm:$0xff]
      %v1343 = vld [vmem:[%s1030 + $0x17] sm:$0x1]
      %v1344 = vld [vmem:[%s1030 + $0x47] sm:$0xff]
      %v1345 = vld [vmem:[%s1030 + $0x4f] sm:$0xff]
      %v1346 = vld [vmem:[%s1030 + $0x57] sm:$0x1]
      %v1347 = vld [vmem:[%s1030 + $0x87] sm:$0xff]
      %v1348 = vld [vmem:[%s1030 + $0x8f] sm:$0xff]
      %v1349 = vld [vmem:[%s1030 + $0x97] sm:$0x1]
      %v1350 = vld [vmem:[%s1030 + $0xc7] sm:$0xff]
      %v1351 = vld [vmem:[%s1030 + $0xcf] sm:$0xff]
      %v1352 = vld [vmem:[%s1030 + $0xd7] sm:$0x1]
      %v1353 = vld [vmem:[%s1030 + $0x107] sm:$0xff]
      %v1354 = vld [vmem:[%s1030 + $0x10f] sm:$0xff]
      %v1355 = vld [vmem:[%s1030 + $0x117] sm:$0x1]
      %v1356 = vld [vmem:[%s1030 + $0x147] sm:$0xff]
      %v1357 = vld [vmem:[%s1030 + $0x14f] sm:$0xff]
      %v1358 = vld [vmem:[%s1030 + $0x157] sm:$0x1]
      %v1359 = vld [vmem:[%s1030 + $0x187] sm:$0xff]
      %v1360 = vld [vmem:[%s1030 + $0x18f] sm:$0xff]
      %v1361 = vld [vmem:[%s1030 + $0x197] sm:$0x1]
      %v1362 = vld [vmem:[%s1030 + $0x1c7] sm:$0xff]
      %v1363 = vld [vmem:[%s1030 + $0x1cf] sm:$0xff]
      %v1364 = vld [vmem:[%s1030 + $0x1d7] sm:$0x1]
      %v1365 = vlaneseq
      %v1366 = vshrl.u32 %v1365, 7
      %v1367 = vsub.s32 3, %v1366
      %v1368 = vrot.slane %v444, %v1367
      %v1369 = vmul.f32 %v1341, %v1368
      %v1370 = vmul.f32 %v1342, %v1368
      %v1371 = vmul.f32 %v1344, %v1368
      %v1372 = vmul.f32 %v1345, %v1368
      %v1373 = vmul.f32 %v1347, %v1368
      %v1374 = vmul.f32 %v1348, %v1368
      %v1375 = vmul.f32 %v1350, %v1368
      %v1376 = vmul.f32 %v1351, %v1368
      %v1377 = vmul.f32 %v1353, %v1368
      %v1378 = vmul.f32 %v1354, %v1368
      %v1379 = vmul.f32 %v1356, %v1368
      %v1380 = vmul.f32 %v1357, %v1368
      %v1381 = vmul.f32 %v1359, %v1368
      %v1382 = vmul.f32 %v1360, %v1368
      %v1383 = vmul.f32 %v1362, %v1368
      %v1384 = vmul.f32 %v1363, %v1368
      %v1385 = vadd.f32 %v1325, %v1369
      %v1386 = vadd.f32 %v1326, %v1370
      %v1387 = vadd.f32 %v1327, %v1371
      %v1388 = vadd.f32 %v1328, %v1372
      %v1389 = vadd.f32 %v1329, %v1373
      %v1390 = vadd.f32 %v1330, %v1374
      %v1391 = vadd.f32 %v1331, %v1375
      %v1392 = vadd.f32 %v1332, %v1376
      %v1393 = vadd.f32 %v1333, %v1377
      %v1394 = vadd.f32 %v1334, %v1378
      %v1395 = vadd.f32 %v1335, %v1379
      %v1396 = vadd.f32 %v1336, %v1380
      %v1397 = vadd.f32 %v1337, %v1381
      %v1398 = vadd.f32 %v1338, %v1382
      %v1399 = vadd.f32 %v1339, %v1383
      %v1400 = vadd.f32 %v1340, %v1384
      %v1401 = vlaneseq
      %v1402 = vshrl.u32 %v1401, 7
      %v1403 = vsub.s32 4, %v1402
      %v1404 = vrot.slane %v444, %v1403
      %v1405 = vmul.f32 %v1341, %v1404
      %v1406 = vmul.f32 %v1342, %v1404
      %v1407 = vmul.f32 %v1344, %v1404
      %v1408 = vmul.f32 %v1345, %v1404
      %v1409 = vmul.f32 %v1347, %v1404
      %v1410 = vmul.f32 %v1348, %v1404
      %v1411 = vmul.f32 %v1350, %v1404
      %v1412 = vmul.f32 %v1351, %v1404
      %v1413 = vmul.f32 %v1353, %v1404
      %v1414 = vmul.f32 %v1354, %v1404
      %v1415 = vmul.f32 %v1356, %v1404
      %v1416 = vmul.f32 %v1357, %v1404
      %v1417 = vmul.f32 %v1359, %v1404
      %v1418 = vmul.f32 %v1360, %v1404
      %v1419 = vmul.f32 %v1362, %v1404
      %v1420 = vmul.f32 %v1363, %v1404
      %v1437 = vrot.slane %v1405, 1
      %v1438 = vrot.slane %v1406, 1
      %v1439 = vsel %vm1159, %v1437, %v1438
      %v1440 = vrot.slane %v1407, 1
      %v1441 = vrot.slane %v1408, 1
      %v1442 = vsel %vm1159, %v1440, %v1441
      %v1443 = vrot.slane %v1409, 1
      %v1444 = vrot.slane %v1410, 1
      %v1445 = vsel %vm1159, %v1443, %v1444
      %v1446 = vrot.slane %v1411, 1
      %v1447 = vrot.slane %v1412, 1
      %v1448 = vsel %vm1159, %v1446, %v1447
      %v1449 = vrot.slane %v1413, 1
      %v1450 = vrot.slane %v1414, 1
      %v1451 = vsel %vm1159, %v1449, %v1450
      %v1452 = vrot.slane %v1415, 1
      %v1453 = vrot.slane %v1416, 1
      %v1454 = vsel %vm1159, %v1452, %v1453
      %v1455 = vrot.slane %v1417, 1
      %v1456 = vrot.slane %v1418, 1
      %v1457 = vsel %vm1159, %v1455, %v1456
      %v1458 = vrot.slane %v1419, 1
      %v1459 = vrot.slane %v1420, 1
      %v1460 = vsel %vm1159, %v1458, %v1459
      %v1477 = vadd.f32 %v1385, %v1439
      %v1478 = vadd.f32 %v1386, %v1438
      %v1479 = vadd.f32 %v1387, %v1442
      %v1480 = vadd.f32 %v1388, %v1441
      %v1481 = vadd.f32 %v1389, %v1445
      %v1482 = vadd.f32 %v1390, %v1444
      %v1483 = vadd.f32 %v1391, %v1448
      %v1484 = vadd.f32 %v1392, %v1447
      %v1485 = vadd.f32 %v1393, %v1451
      %v1486 = vadd.f32 %v1394, %v1450
      %v1487 = vadd.f32 %v1395, %v1454
      %v1488 = vadd.f32 %v1396, %v1453
      %v1489 = vadd.f32 %v1397, %v1457
      %v1490 = vadd.f32 %v1398, %v1456
      %v1491 = vadd.f32 %v1399, %v1460
      %v1492 = vadd.f32 %v1400, %v1459
      %v1493 = vlaneseq
      %v1494 = vshrl.u32 %v1493, 7
      %v1495 = vsub.s32 5, %v1494
      %v1496 = vrot.slane %v444, %v1495
      %v1497 = vmul.f32 %v1341, %v1496
      %v1498 = vmul.f32 %v1342, %v1496
      %v1499 = vmul.f32 %v1343, %v1496
      %v1500 = vmul.f32 %v1344, %v1496
      %v1501 = vmul.f32 %v1345, %v1496
      %v1502 = vmul.f32 %v1346, %v1496
      %v1503 = vmul.f32 %v1347, %v1496
      %v1504 = vmul.f32 %v1348, %v1496
      %v1505 = vmul.f32 %v1349, %v1496
      %v1506 = vmul.f32 %v1350, %v1496
      %v1507 = vmul.f32 %v1351, %v1496
      %v1508 = vmul.f32 %v1352, %v1496
      %v1509 = vmul.f32 %v1353, %v1496
      %v1510 = vmul.f32 %v1354, %v1496
      %v1511 = vmul.f32 %v1355, %v1496
      %v1512 = vmul.f32 %v1356, %v1496
      %v1513 = vmul.f32 %v1357, %v1496
      %v1514 = vmul.f32 %v1358, %v1496
      %v1515 = vmul.f32 %v1359, %v1496
      %v1516 = vmul.f32 %v1360, %v1496
      %v1517 = vmul.f32 %v1361, %v1496
      %v1518 = vmul.f32 %v1362, %v1496
      %v1519 = vmul.f32 %v1363, %v1496
      %v1520 = vmul.f32 %v1364, %v1496
      %v1545 = vrot.slane %v1497, 2
      %v1546 = vrot.slane %v1498, 2
      %v1547 = vsel %vm1268, %v1545, %v1546
      %v1548 = vrot.slane %v1499, 2
      %v1549 = vsel %vm1268, %v1546, %v1548
      %v1550 = vrot.slane %v1500, 2
      %v1551 = vrot.slane %v1501, 2
      %v1552 = vsel %vm1268, %v1550, %v1551
      %v1553 = vrot.slane %v1502, 2
      %v1554 = vsel %vm1268, %v1551, %v1553
      %v1555 = vrot.slane %v1503, 2
      %v1556 = vrot.slane %v1504, 2
      %v1557 = vsel %vm1268, %v1555, %v1556
      %v1558 = vrot.slane %v1505, 2
      %v1559 = vsel %vm1268, %v1556, %v1558
      %v1560 = vrot.slane %v1506, 2
      %v1561 = vrot.slane %v1507, 2
      %v1562 = vsel %vm1268, %v1560, %v1561
      %v1563 = vrot.slane %v1508, 2
      %v1564 = vsel %vm1268, %v1561, %v1563
      %v1565 = vrot.slane %v1509, 2
      %v1566 = vrot.slane %v1510, 2
      %v1567 = vsel %vm1268, %v1565, %v1566
      %v1568 = vrot.slane %v1511, 2
      %v1569 = vsel %vm1268, %v1566, %v1568
      %v1570 = vrot.slane %v1512, 2
      %v1571 = vrot.slane %v1513, 2
      %v1572 = vsel %vm1268, %v1570, %v1571
      %v1573 = vrot.slane %v1514, 2
      %v1574 = vsel %vm1268, %v1571, %v1573
      %v1575 = vrot.slane %v1515, 2
      %v1576 = vrot.slane %v1516, 2
      %v1577 = vsel %vm1268, %v1575, %v1576
      %v1578 = vrot.slane %v1517, 2
      %v1579 = vsel %vm1268, %v1576, %v1578
      %v1580 = vrot.slane %v1518, 2
      %v1581 = vrot.slane %v1519, 2
      %v1582 = vsel %vm1268, %v1580, %v1581
      %v1583 = vrot.slane %v1520, 2
      %v1584 = vsel %vm1268, %v1581, %v1583
      %v1601 = vadd.f32 %v1477, %v1547
      %v1602 = vadd.f32 %v1478, %v1549
      %v1603 = vadd.f32 %v1479, %v1552
      %v1604 = vadd.f32 %v1480, %v1554
      %v1605 = vadd.f32 %v1481, %v1557
      %v1606 = vadd.f32 %v1482, %v1559
      %v1607 = vadd.f32 %v1483, %v1562
      %v1608 = vadd.f32 %v1484, %v1564
      %v1609 = vadd.f32 %v1485, %v1567
      %v1610 = vadd.f32 %v1486, %v1569
      %v1611 = vadd.f32 %v1487, %v1572
      %v1612 = vadd.f32 %v1488, %v1574
      %v1613 = vadd.f32 %v1489, %v1577
      %v1614 = vadd.f32 %v1490, %v1579
      %v1615 = vadd.f32 %v1491, %v1582
      %v1616 = vadd.f32 %v1492, %v1584
      %s1617 = scalar_lea.vmem [#allocation2], 64
      %v1618 = vld [vmem:[%s1617 + $0x7] sm:$0xff]
      %v1619 = vld [vmem:[%s1617 + $0xf] sm:$0xff]
      %v1620 = vld [vmem:[%s1617 + $0x17] sm:$0x1]
      %v1621 = vld [vmem:[%s1617 + $0x47] sm:$0xff]
      %v1622 = vld [vmem:[%s1617 + $0x4f] sm:$0xff]
      %v1623 = vld [vmem:[%s1617 + $0x57] sm:$0x1]
      %v1624 = vld [vmem:[%s1617 + $0x87] sm:$0xff]
      %v1625 = vld [vmem:[%s1617 + $0x8f] sm:$0xff]
      %v1626 = vld [vmem:[%s1617 + $0x97] sm:$0x1]
      %v1627 = vld [vmem:[%s1617 + $0xc7] sm:$0xff]
      %v1628 = vld [vmem:[%s1617 + $0xcf] sm:$0xff]
      %v1629 = vld [vmem:[%s1617 + $0xd7] sm:$0x1]
      %v1630 = vld [vmem:[%s1617 + $0x107] sm:$0xff]
      %v1631 = vld [vmem:[%s1617 + $0x10f] sm:$0xff]
      %v1632 = vld [vmem:[%s1617 + $0x117] sm:$0x1]
      %v1633 = vld [vmem:[%s1617 + $0x147] sm:$0xff]
      %v1634 = vld [vmem:[%s1617 + $0x14f] sm:$0xff]
      %v1635 = vld [vmem:[%s1617 + $0x157] sm:$0x1]
      %v1636 = vld [vmem:[%s1617 + $0x187] sm:$0xff]
      %v1637 = vld [vmem:[%s1617 + $0x18f] sm:$0xff]
      %v1638 = vld [vmem:[%s1617 + $0x197] sm:$0x1]
      %v1639 = vld [vmem:[%s1617 + $0x1c7] sm:$0xff]
      %v1640 = vld [vmem:[%s1617 + $0x1cf] sm:$0xff]
      %v1641 = vld [vmem:[%s1617 + $0x1d7] sm:$0x1]
      %v1642 = vlaneseq
      %v1643 = vshrl.u32 %v1642, 7
      %v1644 = vsub.s32 6, %v1643
      %v1645 = vrot.slane %v444, %v1644
      %v1646 = vmul.f32 %v1618, %v1645
      %v1647 = vmul.f32 %v1619, %v1645
      %v1648 = vmul.f32 %v1621, %v1645
      %v1649 = vmul.f32 %v1622, %v1645
      %v1650 = vmul.f32 %v1624, %v1645
      %v1651 = vmul.f32 %v1625, %v1645
      %v1652 = vmul.f32 %v1627, %v1645
      %v1653 = vmul.f32 %v1628, %v1645
      %v1654 = vmul.f32 %v1630, %v1645
      %v1655 = vmul.f32 %v1631, %v1645
      %v1656 = vmul.f32 %v1633, %v1645
      %v1657 = vmul.f32 %v1634, %v1645
      %v1658 = vmul.f32 %v1636, %v1645
      %v1659 = vmul.f32 %v1637, %v1645
      %v1660 = vmul.f32 %v1639, %v1645
      %v1661 = vmul.f32 %v1640, %v1645
      %v1662 = vadd.f32 %v1601, %v1646
      %v1663 = vadd.f32 %v1602, %v1647
      %v1664 = vadd.f32 %v1603, %v1648
      %v1665 = vadd.f32 %v1604, %v1649
      %v1666 = vadd.f32 %v1605, %v1650
      %v1667 = vadd.f32 %v1606, %v1651
      %v1668 = vadd.f32 %v1607, %v1652
      %v1669 = vadd.f32 %v1608, %v1653
      %v1670 = vadd.f32 %v1609, %v1654
      %v1671 = vadd.f32 %v1610, %v1655
      %v1672 = vadd.f32 %v1611, %v1656
      %v1673 = vadd.f32 %v1612, %v1657
      %v1674 = vadd.f32 %v1613, %v1658
      %v1675 = vadd.f32 %v1614, %v1659
      %v1676 = vadd.f32 %v1615, %v1660
      %v1677 = vadd.f32 %v1616, %v1661
      %v1678 = vlaneseq
      %v1679 = vshrl.u32 %v1678, 7
      %v1680 = vsub.s32 7, %v1679
      %v1681 = vrot.slane %v444, %v1680
      %v1682 = vmul.f32 %v1618, %v1681
      %v1683 = vmul.f32 %v1619, %v1681
      %v1684 = vmul.f32 %v1621, %v1681
      %v1685 = vmul.f32 %v1622, %v1681
      %v1686 = vmul.f32 %v1624, %v1681
      %v1687 = vmul.f32 %v1625, %v1681
      %v1688 = vmul.f32 %v1627, %v1681
      %v1689 = vmul.f32 %v1628, %v1681
      %v1690 = vmul.f32 %v1630, %v1681
      %v1691 = vmul.f32 %v1631, %v1681
      %v1692 = vmul.f32 %v1633, %v1681
      %v1693 = vmul.f32 %v1634, %v1681
      %v1694 = vmul.f32 %v1636, %v1681
      %v1695 = vmul.f32 %v1637, %v1681
      %v1696 = vmul.f32 %v1639, %v1681
      %v1697 = vmul.f32 %v1640, %v1681
      %v1714 = vrot.slane %v1682, 1
      %v1715 = vrot.slane %v1683, 1
      %v1716 = vsel %vm1159, %v1714, %v1715
      %v1717 = vrot.slane %v1684, 1
      %v1718 = vrot.slane %v1685, 1
      %v1719 = vsel %vm1159, %v1717, %v1718
      %v1720 = vrot.slane %v1686, 1
      %v1721 = vrot.slane %v1687, 1
      %v1722 = vsel %vm1159, %v1720, %v1721
      %v1723 = vrot.slane %v1688, 1
      %v1724 = vrot.slane %v1689, 1
      %v1725 = vsel %vm1159, %v1723, %v1724
      %v1726 = vrot.slane %v1690, 1
      %v1727 = vrot.slane %v1691, 1
      %v1728 = vsel %vm1159, %v1726, %v1727
      %v1729 = vrot.slane %v1692, 1
      %v1730 = vrot.slane %v1693, 1
      %v1731 = vsel %vm1159, %v1729, %v1730
      %v1732 = vrot.slane %v1694, 1
      %v1733 = vrot.slane %v1695, 1
      %v1734 = vsel %vm1159, %v1732, %v1733
      %v1735 = vrot.slane %v1696, 1
      %v1736 = vrot.slane %v1697, 1
      %v1737 = vsel %vm1159, %v1735, %v1736
      %v1754 = vadd.f32 %v1662, %v1716
      %v1755 = vadd.f32 %v1663, %v1715
      %v1756 = vadd.f32 %v1664, %v1719
      %v1757 = vadd.f32 %v1665, %v1718
      %v1758 = vadd.f32 %v1666, %v1722
      %v1759 = vadd.f32 %v1667, %v1721
      %v1760 = vadd.f32 %v1668, %v1725
      %v1761 = vadd.f32 %v1669, %v1724
      %v1762 = vadd.f32 %v1670, %v1728
      %v1763 = vadd.f32 %v1671, %v1727
      %v1764 = vadd.f32 %v1672, %v1731
      %v1765 = vadd.f32 %v1673, %v1730
      %v1766 = vadd.f32 %v1674, %v1734
      %v1767 = vadd.f32 %v1675, %v1733
      %v1768 = vadd.f32 %v1676, %v1737
      %v1769 = vadd.f32 %v1677, %v1736
      %v1770 = vlaneseq
      %v1771 = vshrl.u32 %v1770, 7
      %v1772 = vsub.s32 0, %v1771
      %v1773 = vrot.slane %v445, %v1772
      %v1774 = vmul.f32 %v1618, %v1773
      %v1775 = vmul.f32 %v1619, %v1773
      %v1776 = vmul.f32 %v1620, %v1773
      %v1777 = vmul.f32 %v1621, %v1773
      %v1778 = vmul.f32 %v1622, %v1773
      %v1779 = vmul.f32 %v1623, %v1773
      %v1780 = vmul.f32 %v1624, %v1773
      %v1781 = vmul.f32 %v1625, %v1773
      %v1782 = vmul.f32 %v1626, %v1773
      %v1783 = vmul.f32 %v1627, %v1773
      %v1784 = vmul.f32 %v1628, %v1773
      %v1785 = vmul.f32 %v1629, %v1773
      %v1786 = vmul.f32 %v1630, %v1773
      %v1787 = vmul.f32 %v1631, %v1773
      %v1788 = vmul.f32 %v1632, %v1773
      %v1789 = vmul.f32 %v1633, %v1773
      %v1790 = vmul.f32 %v1634, %v1773
      %v1791 = vmul.f32 %v1635, %v1773
      %v1792 = vmul.f32 %v1636, %v1773
      %v1793 = vmul.f32 %v1637, %v1773
      %v1794 = vmul.f32 %v1638, %v1773
      %v1795 = vmul.f32 %v1639, %v1773
      %v1796 = vmul.f32 %v1640, %v1773
      %v1797 = vmul.f32 %v1641, %v1773
      %v1822 = vrot.slane %v1774, 2
      %v1823 = vrot.slane %v1775, 2
      %v1824 = vsel %vm1268, %v1822, %v1823
      %v1825 = vrot.slane %v1776, 2
      %v1826 = vsel %vm1268, %v1823, %v1825
      %v1827 = vrot.slane %v1777, 2
      %v1828 = vrot.slane %v1778, 2
      %v1829 = vsel %vm1268, %v1827, %v1828
      %v1830 = vrot.slane %v1779, 2
      %v1831 = vsel %vm1268, %v1828, %v1830
      %v1832 = vrot.slane %v1780, 2
      %v1833 = vrot.slane %v1781, 2
      %v1834 = vsel %vm1268, %v1832, %v1833
      %v1835 = vrot.slane %v1782, 2
      %v1836 = vsel %vm1268, %v1833, %v1835
      %v1837 = vrot.slane %v1783, 2
      %v1838 = vrot.slane %v1784, 2
      %v1839 = vsel %vm1268, %v1837, %v1838
      %v1840 = vrot.slane %v1785, 2
      %v1841 = vsel %vm1268, %v1838, %v1840
      %v1842 = vrot.slane %v1786, 2
      %v1843 = vrot.slane %v1787, 2
      %v1844 = vsel %vm1268, %v1842, %v1843
      %v1845 = vrot.slane %v1788, 2
      %v1846 = vsel %vm1268, %v1843, %v1845
      %v1847 = vrot.slane %v1789, 2
      %v1848 = vrot.slane %v1790, 2
      %v1849 = vsel %vm1268, %v1847, %v1848
      %v1850 = vrot.slane %v1791, 2
      %v1851 = vsel %vm1268, %v1848, %v1850
      %v1852 = vrot.slane %v1792, 2
      %v1853 = vrot.slane %v1793, 2
      %v1854 = vsel %vm1268, %v1852, %v1853
      %v1855 = vrot.slane %v1794, 2
      %v1856 = vsel %vm1268, %v1853, %v1855
      %v1857 = vrot.slane %v1795, 2
      %v1858 = vrot.slane %v1796, 2
      %v1859 = vsel %vm1268, %v1857, %v1858
      %v1860 = vrot.slane %v1797, 2
      %v1861 = vsel %vm1268, %v1858, %v1860
      %v1878 = vadd.f32 %v1754, %v1824
      %v1879 = vadd.f32 %v1755, %v1826
      %v1880 = vadd.f32 %v1756, %v1829
      %v1881 = vadd.f32 %v1757, %v1831
      %v1882 = vadd.f32 %v1758, %v1834
      %v1883 = vadd.f32 %v1759, %v1836
      %v1884 = vadd.f32 %v1760, %v1839
      %v1885 = vadd.f32 %v1761, %v1841
      %v1886 = vadd.f32 %v1762, %v1844
      %v1887 = vadd.f32 %v1763, %v1846
      %v1888 = vadd.f32 %v1764, %v1849
      %v1889 = vadd.f32 %v1765, %v1851
      %v1890 = vadd.f32 %v1766, %v1854
      %v1891 = vadd.f32 %v1767, %v1856
      %v1892 = vadd.f32 %v1768, %v1859
      %v1893 = vadd.f32 %v1769, %v1861
      %v1894 = vld [vmem:[%s12] sm:$0xff]
      %vm1895 = vcmask 121856
      %v1897 = vsel %vm1895, %v1894, 0
      %v1900 = vsel %vm1159, %v1879, 0
      %1902 = vmatprep.subr.mxu0 0.0
      %1903 = vmatpush1.msra.mxu0 %v1878
      %1904 = vmatprep.subr.mxu0 0.0
      %1905 = vmatpush1.msra.mxu0 %v1900
      %1906 = vmatprep.subr.mxu0 0.0
      %1907 = vmatpush1.msra.mxu0 0.0
      %1908 = vmatprep.subr.mxu0 0.0
      %1909 = vmatpush1.msra.mxu0 0.0
      %1910 = vmatprep.subr.mxu0 0.0
      %1911 = vmatpush1.msra.mxu0 0.0
      %1912 = vmatprep.subr.mxu0 0.0
      %1913 = vmatpush1.msra.mxu0 0.0
      %1914 = vmatprep.subr.mxu0 0.0
      %1915 = vmatpush1.msra.mxu0 0.0
      %1916 = vmatprep.subr.mxu0 0.0
      %1917 = vmatpush1.msra.mxu0 0.0
      %1918 = vmatprep.subr.mxu0 0.0
      %1919 = vmatpush1.msra.mxu0 0.0
      %1920 = vmatprep.subr.mxu0 0.0
      %1921 = vmatpush1.msra.mxu0 0.0
      %1922 = vmatprep.subr.mxu0 0.0
      %1923 = vmatpush1.msra.mxu0 0.0
      %1924 = vmatprep.subr.mxu0 0.0
      %1925 = vmatpush1.msra.mxu0 0.0
      %1926 = vmatprep.subr.mxu0 0.0
      %1927 = vmatpush1.msra.mxu0 0.0
      %1928 = vmatprep.subr.mxu0 0.0
      %1929 = vmatpush1.msra.mxu0 0.0
      %1930 = vmatprep.subr.mxu0 0.0
      %1931 = vmatpush1.msra.mxu0 0.0
      %1932 = vmatprep.subr.mxu0 0.0
      %1933 = vmatpush1.msra.mxu0 0.0
      %1934 = vmatprep.subr.mxu0 0.0
      %1935 = vmatpush1.msra.mxu0 0.0
      %1936 = vmatprep.subr.mxu0 0.0
      %1937 = vmatpush1.msra.mxu0 0.0
      %1938 = vmatprep.subr.mxu0 0.0
      %1939 = vmatpush1.msra.mxu0 0.0
      %1940 = vmatprep.subr.mxu0 0.0
      %1941 = vmatpush1.msra.mxu0 0.0
      %1942 = vmatprep.subr.mxu0 0.0
      %1943 = vmatpush1.msra.mxu0 0.0
      %1944 = vmatprep.subr.mxu0 0.0
      %1945 = vmatpush1.msra.mxu0 0.0
      %1946 = vmatprep.subr.mxu0 0.0
      %1947 = vmatpush1.msra.mxu0 0.0
      %1948 = vmatprep.subr.mxu0 0.0
      %1949 = vmatpush1.msra.mxu0 0.0
      %1950 = vmatprep.subr.mxu0 0.0
      %1951 = vmatpush1.msra.mxu0 0.0
      %1952 = vmatprep.subr.mxu0 0.0
      %1953 = vmatpush1.msra.mxu0 0.0
      %1954 = vmatprep.subr.mxu0 0.0
      %1955 = vmatpush1.msra.mxu0 0.0
      %1956 = vmatprep.subr.mxu0 0.0
      %1957 = vmatpush1.msra.mxu0 0.0
      %1958 = vmatprep.subr.mxu0 0.0
      %1959 = vmatpush1.msra.mxu0 0.0
      %1960 = vmatprep.subr.mxu0 0.0
      %1961 = vmatpush1.msra.mxu0 0.0
      %1962 = vmatprep.subr.mxu0 0.0
      %1963 = vmatpush1.msra.mxu0 0.0
      %1964 = vmatprep.subr.mxu0 0.0
      %1965 = vmatpush1.msra.mxu0 0.0
      %1966 = vmatprep.mubr.f32.mxu0 0.0
      %1967 = vmatmul.mubr.f32.gmra.mrb[0].mxu0 %v1897
      %v1968 = vpop.f32.mrb[0].mxu0
      %v1969 = vadd.f32 0.0, %v1968
      %v1970 = vpop.f32.mrb[0].mxu0
      %1971 = vdwg.mxu0
      %v1973 = vsel %vm1159, %v1881, 0
      %1975 = vmatprep.subr.mxu0 0.0
      %1976 = vmatpush1.msra.mxu0 %v1880
      %1977 = vmatprep.subr.mxu0 0.0
      %1978 = vmatpush1.msra.mxu0 %v1973
      %1979 = vmatprep.subr.mxu0 0.0
      %1980 = vmatpush1.msra.mxu0 0.0
      %1981 = vmatprep.subr.mxu0 0.0
      %1982 = vmatpush1.msra.mxu0 0.0
      %1983 = vmatprep.subr.mxu0 0.0
      %1984 = vmatpush1.msra.mxu0 0.0
      %1985 = vmatprep.subr.mxu0 0.0
      %1986 = vmatpush1.msra.mxu0 0.0
      %1987 = vmatprep.subr.mxu0 0.0
      %1988 = vmatpush1.msra.mxu0 0.0
      %1989 = vmatprep.subr.mxu0 0.0
      %1990 = vmatpush1.msra.mxu0 0.0
      %1991 = vmatprep.subr.mxu0 0.0
      %1992 = vmatpush1.msra.mxu0 0.0
      %1993 = vmatprep.subr.mxu0 0.0
      %1994 = vmatpush1.msra.mxu0 0.0
      %1995 = vmatprep.subr.mxu0 0.0
      %1996 = vmatpush1.msra.mxu0 0.0
      %1997 = vmatprep.subr.mxu0 0.0
      %1998 = vmatpush1.msra.mxu0 0.0
      %1999 = vmatprep.subr.mxu0 0.0
      %2000 = vmatpush1.msra.mxu0 0.0
      %2001 = vmatprep.subr.mxu0 0.0
      %2002 = vmatpush1.msra.mxu0 0.0
      %2003 = vmatprep.subr.mxu0 0.0
      %2004 = vmatpush1.msra.mxu0 0.0
      %2005 = vmatprep.subr.mxu0 0.0
      %2006 = vmatpush1.msra.mxu0 0.0
      %2007 = vmatprep.subr.mxu0 0.0
      %2008 = vmatpush1.msra.mxu0 0.0
      %2009 = vmatprep.subr.mxu0 0.0
      %2010 = vmatpush1.msra.mxu0 0.0
      %2011 = vmatprep.subr.mxu0 0.0
      %2012 = vmatpush1.msra.mxu0 0.0
      %2013 = vmatprep.subr.mxu0 0.0
      %2014 = vmatpush1.msra.mxu0 0.0
      %2015 = vmatprep.subr.mxu0 0.0
      %2016 = vmatpush1.msra.mxu0 0.0
      %2017 = vmatprep.subr.mxu0 0.0
      %2018 = vmatpush1.msra.mxu0 0.0
      %2019 = vmatprep.subr.mxu0 0.0
      %2020 = vmatpush1.msra.mxu0 0.0
      %2021 = vmatprep.subr.mxu0 0.0
      %2022 = vmatpush1.msra.mxu0 0.0
      %2023 = vmatprep.subr.mxu0 0.0
      %2024 = vmatpush1.msra.mxu0 0.0
      %2025 = vmatprep.subr.mxu0 0.0
      %2026 = vmatpush1.msra.mxu0 0.0
      %2027 = vmatprep.subr.mxu0 0.0
      %2028 = vmatpush1.msra.mxu0 0.0
      %2029 = vmatprep.subr.mxu0 0.0
      %2030 = vmatpush1.msra.mxu0 0.0
      %2031 = vmatprep.subr.mxu0 0.0
      %2032 = vmatpush1.msra.mxu0 0.0
      %2033 = vmatprep.subr.mxu0 0.0
      %2034 = vmatpush1.msra.mxu0 0.0
      %2035 = vmatprep.subr.mxu0 0.0
      %2036 = vmatpush1.msra.mxu0 0.0
      %2037 = vmatprep.subr.mxu0 0.0
      %2038 = vmatpush1.msra.mxu0 0.0
      %2039 = vmatprep.mubr.f32.mxu0 0.0
      %2040 = vmatmul.mubr.f32.gmra.mrb[0].mxu0 %v1897
      %v2041 = vpop.f32.mrb[0].mxu0
      %v2042 = vadd.f32 0.0, %v2041
      %v2043 = vpop.f32.mrb[0].mxu0
      %2044 = vdwg.mxu0
      %v2046 = vsel %vm1159, %v1883, 0
      %2048 = vmatprep.subr.mxu0 0.0
      %2049 = vmatpush1.msra.mxu0 %v1882
      %2050 = vmatprep.subr.mxu0 0.0
      %2051 = vmatpush1.msra.mxu0 %v2046
      %2052 = vmatprep.subr.mxu0 0.0
      %2053 = vmatpush1.msra.mxu0 0.0
      %2054 = vmatprep.subr.mxu0 0.0
      %2055 = vmatpush1.msra.mxu0 0.0
      %2056 = vmatprep.subr.mxu0 0.0
      %2057 = vmatpush1.msra.mxu0 0.0
      %2058 = vmatprep.subr.mxu0 0.0
      %2059 = vmatpush1.msra.mxu0 0.0
      %2060 = vmatprep.subr.mxu0 0.0
      %2061 = vmatpush1.msra.mxu0 0.0
      %2062 = vmatprep.subr.mxu0 0.0
      %2063 = vmatpush1.msra.mxu0 0.0
      %2064 = vmatprep.subr.mxu0 0.0
      %2065 = vmatpush1.msra.mxu0 0.0
      %2066 = vmatprep.subr.mxu0 0.0
      %2067 = vmatpush1.msra.mxu0 0.0
      %2068 = vmatprep.subr.mxu0 0.0
      %2069 = vmatpush1.msra.mxu0 0.0
      %2070 = vmatprep.subr.mxu0 0.0
      %2071 = vmatpush1.msra.mxu0 0.0
      %2072 = vmatprep.subr.mxu0 0.0
      %2073 = vmatpush1.msra.mxu0 0.0
      %2074 = vmatprep.subr.mxu0 0.0
      %2075 = vmatpush1.msra.mxu0 0.0
      %2076 = vmatprep.subr.mxu0 0.0
      %2077 = vmatpush1.msra.mxu0 0.0
      %2078 = vmatprep.subr.mxu0 0.0
      %2079 = vmatpush1.msra.mxu0 0.0
      %2080 = vmatprep.subr.mxu0 0.0
      %2081 = vmatpush1.msra.mxu0 0.0
      %2082 = vmatprep.subr.mxu0 0.0
      %2083 = vmatpush1.msra.mxu0 0.0
      %2084 = vmatprep.subr.mxu0 0.0
      %2085 = vmatpush1.msra.mxu0 0.0
      %2086 = vmatprep.subr.mxu0 0.0
      %2087 = vmatpush1.msra.mxu0 0.0
      %2088 = vmatprep.subr.mxu0 0.0
      %2089 = vmatpush1.msra.mxu0 0.0
      %2090 = vmatprep.subr.mxu0 0.0
      %2091 = vmatpush1.msra.mxu0 0.0
      %2092 = vmatprep.subr.mxu0 0.0
      %2093 = vmatpush1.msra.mxu0 0.0
      %2094 = vmatprep.subr.mxu0 0.0
      %2095 = vmatpush1.msra.mxu0 0.0
      %2096 = vmatprep.subr.mxu0 0.0
      %2097 = vmatpush1.msra.mxu0 0.0
      %2098 = vmatprep.subr.mxu0 0.0
      %2099 = vmatpush1.msra.mxu0 0.0
      %2100 = vmatprep.subr.mxu0 0.0
      %2101 = vmatpush1.msra.mxu0 0.0
      %2102 = vmatprep.subr.mxu0 0.0
      %2103 = vmatpush1.msra.mxu0 0.0
      %2104 = vmatprep.subr.mxu0 0.0
      %2105 = vmatpush1.msra.mxu0 0.0
      %2106 = vmatprep.subr.mxu0 0.0
      %2107 = vmatpush1.msra.mxu0 0.0
      %2108 = vmatprep.subr.mxu0 0.0
      %2109 = vmatpush1.msra.mxu0 0.0
      %2110 = vmatprep.subr.mxu0 0.0
      %2111 = vmatpush1.msra.mxu0 0.0
      %2112 = vmatprep.mubr.f32.mxu0 0.0
      %2113 = vmatmul.mubr.f32.gmra.mrb[0].mxu0 %v1897
      %v2114 = vpop.f32.mrb[0].mxu0
      %v2115 = vadd.f32 0.0, %v2114
      %v2116 = vpop.f32.mrb[0].mxu0
      %2117 = vdwg.mxu0
      %v2119 = vsel %vm1159, %v1885, 0
      %2121 = vmatprep.subr.mxu0 0.0
      %2122 = vmatpush1.msra.mxu0 %v1884
      %2123 = vmatprep.subr.mxu0 0.0
      %2124 = vmatpush1.msra.mxu0 %v2119
      %2125 = vmatprep.subr.mxu0 0.0
      %2126 = vmatpush1.msra.mxu0 0.0
      %2127 = vmatprep.subr.mxu0 0.0
      %2128 = vmatpush1.msra.mxu0 0.0
      %2129 = vmatprep.subr.mxu0 0.0
      %2130 = vmatpush1.msra.mxu0 0.0
      %2131 = vmatprep.subr.mxu0 0.0
      %2132 = vmatpush1.msra.mxu0 0.0
      %2133 = vmatprep.subr.mxu0 0.0
      %2134 = vmatpush1.msra.mxu0 0.0
      %2135 = vmatprep.subr.mxu0 0.0
      %2136 = vmatpush1.msra.mxu0 0.0
      %2137 = vmatprep.subr.mxu0 0.0
      %2138 = vmatpush1.msra.mxu0 0.0
      %2139 = vmatprep.subr.mxu0 0.0
      %2140 = vmatpush1.msra.mxu0 0.0
      %2141 = vmatprep.subr.mxu0 0.0
      %2142 = vmatpush1.msra.mxu0 0.0
      %2143 = vmatprep.subr.mxu0 0.0
      %2144 = vmatpush1.msra.mxu0 0.0
      %2145 = vmatprep.subr.mxu0 0.0
      %2146 = vmatpush1.msra.mxu0 0.0
      %2147 = vmatprep.subr.mxu0 0.0
      %2148 = vmatpush1.msra.mxu0 0.0
      %2149 = vmatprep.subr.mxu0 0.0
      %2150 = vmatpush1.msra.mxu0 0.0
      %2151 = vmatprep.subr.mxu0 0.0
      %2152 = vmatpush1.msra.mxu0 0.0
      %2153 = vmatprep.subr.mxu0 0.0
      %2154 = vmatpush1.msra.mxu0 0.0
      %2155 = vmatprep.subr.mxu0 0.0
      %2156 = vmatpush1.msra.mxu0 0.0
      %2157 = vmatprep.subr.mxu0 0.0
      %2158 = vmatpush1.msra.mxu0 0.0
      %2159 = vmatprep.subr.mxu0 0.0
      %2160 = vmatpush1.msra.mxu0 0.0
      %2161 = vmatprep.subr.mxu0 0.0
      %2162 = vmatpush1.msra.mxu0 0.0
      %2163 = vmatprep.subr.mxu0 0.0
      %2164 = vmatpush1.msra.mxu0 0.0
      %2165 = vmatprep.subr.mxu0 0.0
      %2166 = vmatpush1.msra.mxu0 0.0
      %2167 = vmatprep.subr.mxu0 0.0
      %2168 = vmatpush1.msra.mxu0 0.0
      %2169 = vmatprep.subr.mxu0 0.0
      %2170 = vmatpush1.msra.mxu0 0.0
      %2171 = vmatprep.subr.mxu0 0.0
      %2172 = vmatpush1.msra.mxu0 0.0
      %2173 = vmatprep.subr.mxu0 0.0
      %2174 = vmatpush1.msra.mxu0 0.0
      %2175 = vmatprep.subr.mxu0 0.0
      %2176 = vmatpush1.msra.mxu0 0.0
      %2177 = vmatprep.subr.mxu0 0.0
      %2178 = vmatpush1.msra.mxu0 0.0
      %2179 = vmatprep.subr.mxu0 0.0
      %2180 = vmatpush1.msra.mxu0 0.0
      %2181 = vmatprep.subr.mxu0 0.0
      %2182 = vmatpush1.msra.mxu0 0.0
      %2183 = vmatprep.subr.mxu0 0.0
      %2184 = vmatpush1.msra.mxu0 0.0
      %2185 = vmatprep.mubr.f32.mxu0 0.0
      %2186 = vmatmul.mubr.f32.gmra.mrb[0].mxu0 %v1897
      %v2187 = vpop.f32.mrb[0].mxu0
      %v2188 = vadd.f32 0.0, %v2187
      %v2189 = vpop.f32.mrb[0].mxu0
      %2190 = vdwg.mxu0
      %v2192 = vsel %vm1159, %v1887, 0
      %2194 = vmatprep.subr.mxu0 0.0
      %2195 = vmatpush1.msra.mxu0 %v1886
      %2196 = vmatprep.subr.mxu0 0.0
      %2197 = vmatpush1.msra.mxu0 %v2192
      %2198 = vmatprep.subr.mxu0 0.0
      %2199 = vmatpush1.msra.mxu0 0.0
      %2200 = vmatprep.subr.mxu0 0.0
      %2201 = vmatpush1.msra.mxu0 0.0
      %2202 = vmatprep.subr.mxu0 0.0
      %2203 = vmatpush1.msra.mxu0 0.0
      %2204 = vmatprep.subr.mxu0 0.0
      %2205 = vmatpush1.msra.mxu0 0.0
      %2206 = vmatprep.subr.mxu0 0.0
      %2207 = vmatpush1.msra.mxu0 0.0
      %2208 = vmatprep.subr.mxu0 0.0
      %2209 = vmatpush1.msra.mxu0 0.0
      %2210 = vmatprep.subr.mxu0 0.0
      %2211 = vmatpush1.msra.mxu0 0.0
      %2212 = vmatprep.subr.mxu0 0.0
      %2213 = vmatpush1.msra.mxu0 0.0
      %2214 = vmatprep.subr.mxu0 0.0
      %2215 = vmatpush1.msra.mxu0 0.0
      %2216 = vmatprep.subr.mxu0 0.0
      %2217 = vmatpush1.msra.mxu0 0.0
      %2218 = vmatprep.subr.mxu0 0.0
      %2219 = vmatpush1.msra.mxu0 0.0
      %2220 = vmatprep.subr.mxu0 0.0
      %2221 = vmatpush1.msra.mxu0 0.0
      %2222 = vmatprep.subr.mxu0 0.0
      %2223 = vmatpush1.msra.mxu0 0.0
      %2224 = vmatprep.subr.mxu0 0.0
      %2225 = vmatpush1.msra.mxu0 0.0
      %2226 = vmatprep.subr.mxu0 0.0
      %2227 = vmatpush1.msra.mxu0 0.0
      %2228 = vmatprep.subr.mxu0 0.0
      %2229 = vmatpush1.msra.mxu0 0.0
      %2230 = vmatprep.subr.mxu0 0.0
      %2231 = vmatpush1.msra.mxu0 0.0
      %2232 = vmatprep.subr.mxu0 0.0
      %2233 = vmatpush1.msra.mxu0 0.0
      %2234 = vmatprep.subr.mxu0 0.0
      %2235 = vmatpush1.msra.mxu0 0.0
      %2236 = vmatprep.subr.mxu0 0.0
      %2237 = vmatpush1.msra.mxu0 0.0
      %2238 = vmatprep.subr.mxu0 0.0
      %2239 = vmatpush1.msra.mxu0 0.0
      %2240 = vmatprep.subr.mxu0 0.0
      %2241 = vmatpush1.msra.mxu0 0.0
      %2242 = vmatprep.subr.mxu0 0.0
      %2243 = vmatpush1.msra.mxu0 0.0
      %2244 = vmatprep.subr.mxu0 0.0
      %2245 = vmatpush1.msra.mxu0 0.0
      %2246 = vmatprep.subr.mxu0 0.0
      %2247 = vmatpush1.msra.mxu0 0.0
      %2248 = vmatprep.subr.mxu0 0.0
      %2249 = vmatpush1.msra.mxu0 0.0
      %2250 = vmatprep.subr.mxu0 0.0
      %2251 = vmatpush1.msra.mxu0 0.0
      %2252 = vmatprep.subr.mxu0 0.0
      %2253 = vmatpush1.msra.mxu0 0.0
      %2254 = vmatprep.subr.mxu0 0.0
      %2255 = vmatpush1.msra.mxu0 0.0
      %2256 = vmatprep.subr.mxu0 0.0
      %2257 = vmatpush1.msra.mxu0 0.0
      %2258 = vmatprep.mubr.f32.mxu0 0.0
      %2259 = vmatmul.mubr.f32.gmra.mrb[0].mxu0 %v1897
      %v2260 = vpop.f32.mrb[0].mxu0
      %v2261 = vadd.f32 0.0, %v2260
      %v2262 = vpop.f32.mrb[0].mxu0
      %2263 = vdwg.mxu0
      %v2265 = vsel %vm1159, %v1889, 0
      %2267 = vmatprep.subr.mxu0 0.0
      %2268 = vmatpush1.msra.mxu0 %v1888
      %2269 = vmatprep.subr.mxu0 0.0
      %2270 = vmatpush1.msra.mxu0 %v2265
      %2271 = vmatprep.subr.mxu0 0.0
      %2272 = vmatpush1.msra.mxu0 0.0
      %2273 = vmatprep.subr.mxu0 0.0
      %2274 = vmatpush1.msra.mxu0 0.0
      %2275 = vmatprep.subr.mxu0 0.0
      %2276 = vmatpush1.msra.mxu0 0.0
      %2277 = vmatprep.subr.mxu0 0.0
      %2278 = vmatpush1.msra.mxu0 0.0
      %2279 = vmatprep.subr.mxu0 0.0
      %2280 = vmatpush1.msra.mxu0 0.0
      %2281 = vmatprep.subr.mxu0 0.0
      %2282 = vmatpush1.msra.mxu0 0.0
      %2283 = vmatprep.subr.mxu0 0.0
      %2284 = vmatpush1.msra.mxu0 0.0
      %2285 = vmatprep.subr.mxu0 0.0
      %2286 = vmatpush1.msra.mxu0 0.0
      %2287 = vmatprep.subr.mxu0 0.0
      %2288 = vmatpush1.msra.mxu0 0.0
      %2289 = vmatprep.subr.mxu0 0.0
      %2290 = vmatpush1.msra.mxu0 0.0
      %2291 = vmatprep.subr.mxu0 0.0
      %2292 = vmatpush1.msra.mxu0 0.0
      %2293 = vmatprep.subr.mxu0 0.0
      %2294 = vmatpush1.msra.mxu0 0.0
      %2295 = vmatprep.subr.mxu0 0.0
      %2296 = vmatpush1.msra.mxu0 0.0
      %2297 = vmatprep.subr.mxu0 0.0
      %2298 = vmatpush1.msra.mxu0 0.0
      %2299 = vmatprep.subr.mxu0 0.0
      %2300 = vmatpush1.msra.mxu0 0.0
      %2301 = vmatprep.subr.mxu0 0.0
      %2302 = vmatpush1.msra.mxu0 0.0
      %2303 = vmatprep.subr.mxu0 0.0
      %2304 = vmatpush1.msra.mxu0 0.0
      %2305 = vmatprep.subr.mxu0 0.0
      %2306 = vmatpush1.msra.mxu0 0.0
      %2307 = vmatprep.subr.mxu0 0.0
      %2308 = vmatpush1.msra.mxu0 0.0
      %2309 = vmatprep.subr.mxu0 0.0
      %2310 = vmatpush1.msra.mxu0 0.0
      %2311 = vmatprep.subr.mxu0 0.0
      %2312 = vmatpush1.msra.mxu0 0.0
      %2313 = vmatprep.subr.mxu0 0.0
      %2314 = vmatpush1.msra.mxu0 0.0
      %2315 = vmatprep.subr.mxu0 0.0
      %2316 = vmatpush1.msra.mxu0 0.0
      %2317 = vmatprep.subr.mxu0 0.0
      %2318 = vmatpush1.msra.mxu0 0.0
      %2319 = vmatprep.subr.mxu0 0.0
      %2320 = vmatpush1.msra.mxu0 0.0
      %2321 = vmatprep.subr.mxu0 0.0
      %2322 = vmatpush1.msra.mxu0 0.0
      %2323 = vmatprep.subr.mxu0 0.0
      %2324 = vmatpush1.msra.mxu0 0.0
      %2325 = vmatprep.subr.mxu0 0.0
      %2326 = vmatpush1.msra.mxu0 0.0
      %2327 = vmatprep.subr.mxu0 0.0
      %2328 = vmatpush1.msra.mxu0 0.0
      %2329 = vmatprep.subr.mxu0 0.0
      %2330 = vmatpush1.msra.mxu0 0.0
      %2331 = vmatprep.mubr.f32.mxu0 0.0
      %2332 = vmatmul.mubr.f32.gmra.mrb[0].mxu0 %v1897
      %v2333 = vpop.f32.mrb[0].mxu0
      %v2334 = vadd.f32 0.0, %v2333
      %v2335 = vpop.f32.mrb[0].mxu0
      %2336 = vdwg.mxu0
      %v2338 = vsel %vm1159, %v1891, 0
      %2340 = vmatprep.subr.mxu0 0.0
      %2341 = vmatpush1.msra.mxu0 %v1890
      %2342 = vmatprep.subr.mxu0 0.0
      %2343 = vmatpush1.msra.mxu0 %v2338
      %2344 = vmatprep.subr.mxu0 0.0
      %2345 = vmatpush1.msra.mxu0 0.0
      %2346 = vmatprep.subr.mxu0 0.0
      %2347 = vmatpush1.msra.mxu0 0.0
      %2348 = vmatprep.subr.mxu0 0.0
      %2349 = vmatpush1.msra.mxu0 0.0
      %2350 = vmatprep.subr.mxu0 0.0
      %2351 = vmatpush1.msra.mxu0 0.0
      %2352 = vmatprep.subr.mxu0 0.0
      %2353 = vmatpush1.msra.mxu0 0.0
      %2354 = vmatprep.subr.mxu0 0.0
      %2355 = vmatpush1.msra.mxu0 0.0
      %2356 = vmatprep.subr.mxu0 0.0
      %2357 = vmatpush1.msra.mxu0 0.0
      %2358 = vmatprep.subr.mxu0 0.0
      %2359 = vmatpush1.msra.mxu0 0.0
      %2360 = vmatprep.subr.mxu0 0.0
      %2361 = vmatpush1.msra.mxu0 0.0
      %2362 = vmatprep.subr.mxu0 0.0
      %2363 = vmatpush1.msra.mxu0 0.0
      %2364 = vmatprep.subr.mxu0 0.0
      %2365 = vmatpush1.msra.mxu0 0.0
      %2366 = vmatprep.subr.mxu0 0.0
      %2367 = vmatpush1.msra.mxu0 0.0
      %2368 = vmatprep.subr.mxu0 0.0
      %2369 = vmatpush1.msra.mxu0 0.0
      %2370 = vmatprep.subr.mxu0 0.0
      %2371 = vmatpush1.msra.mxu0 0.0
      %2372 = vmatprep.subr.mxu0 0.0
      %2373 = vmatpush1.msra.mxu0 0.0
      %2374 = vmatprep.subr.mxu0 0.0
      %2375 = vmatpush1.msra.mxu0 0.0
      %2376 = vmatprep.subr.mxu0 0.0
      %2377 = vmatpush1.msra.mxu0 0.0
      %2378 = vmatprep.subr.mxu0 0.0
      %2379 = vmatpush1.msra.mxu0 0.0
      %2380 = vmatprep.subr.mxu0 0.0
      %2381 = vmatpush1.msra.mxu0 0.0
      %2382 = vmatprep.subr.mxu0 0.0
      %2383 = vmatpush1.msra.mxu0 0.0
      %2384 = vmatprep.subr.mxu0 0.0
      %2385 = vmatpush1.msra.mxu0 0.0
      %2386 = vmatprep.subr.mxu0 0.0
      %2387 = vmatpush1.msra.mxu0 0.0
      %2388 = vmatprep.subr.mxu0 0.0
      %2389 = vmatpush1.msra.mxu0 0.0
      %2390 = vmatprep.subr.mxu0 0.0
      %2391 = vmatpush1.msra.mxu0 0.0
      %2392 = vmatprep.subr.mxu0 0.0
      %2393 = vmatpush1.msra.mxu0 0.0
      %2394 = vmatprep.subr.mxu0 0.0
      %2395 = vmatpush1.msra.mxu0 0.0
      %2396 = vmatprep.subr.mxu0 0.0
      %2397 = vmatpush1.msra.mxu0 0.0
      %2398 = vmatprep.subr.mxu0 0.0
      %2399 = vmatpush1.msra.mxu0 0.0
      %2400 = vmatprep.subr.mxu0 0.0
      %2401 = vmatpush1.msra.mxu0 0.0
      %2402 = vmatprep.subr.mxu0 0.0
      %2403 = vmatpush1.msra.mxu0 0.0
      %2404 = vmatprep.mubr.f32.mxu0 0.0
      %2405 = vmatmul.mubr.f32.gmra.mrb[0].mxu0 %v1897
      %v2406 = vpop.f32.mrb[0].mxu0
      %v2407 = vadd.f32 0.0, %v2406
      %v2408 = vpop.f32.mrb[0].mxu0
      %2409 = vdwg.mxu0
      %v2411 = vsel %vm1159, %v1893, 0
      %2413 = vmatprep.subr.mxu0 0.0
      %2414 = vmatpush1.msra.mxu0 %v1892
      %2415 = vmatprep.subr.mxu0 0.0
      %2416 = vmatpush1.msra.mxu0 %v2411
      %2417 = vmatprep.subr.mxu0 0.0
      %2418 = vmatpush1.msra.mxu0 0.0
      %2419 = vmatprep.subr.mxu0 0.0
      %2420 = vmatpush1.msra.mxu0 0.0
      %2421 = vmatprep.subr.mxu0 0.0
      %2422 = vmatpush1.msra.mxu0 0.0
      %2423 = vmatprep.subr.mxu0 0.0
      %2424 = vmatpush1.msra.mxu0 0.0
      %2425 = vmatprep.subr.mxu0 0.0
      %2426 = vmatpush1.msra.mxu0 0.0
      %2427 = vmatprep.subr.mxu0 0.0
      %2428 = vmatpush1.msra.mxu0 0.0
      %2429 = vmatprep.subr.mxu0 0.0
      %2430 = vmatpush1.msra.mxu0 0.0
      %2431 = vmatprep.subr.mxu0 0.0
      %2432 = vmatpush1.msra.mxu0 0.0
      %2433 = vmatprep.subr.mxu0 0.0
      %2434 = vmatpush1.msra.mxu0 0.0
      %2435 = vmatprep.subr.mxu0 0.0
      %2436 = vmatpush1.msra.mxu0 0.0
      %2437 = vmatprep.subr.mxu0 0.0
      %2438 = vmatpush1.msra.mxu0 0.0
      %2439 = vmatprep.subr.mxu0 0.0
      %2440 = vmatpush1.msra.mxu0 0.0
      %2441 = vmatprep.subr.mxu0 0.0
      %2442 = vmatpush1.msra.mxu0 0.0
      %2443 = vmatprep.subr.mxu0 0.0
      %2444 = vmatpush1.msra.mxu0 0.0
      %2445 = vmatprep.subr.mxu0 0.0
      %2446 = vmatpush1.msra.mxu0 0.0
      %2447 = vmatprep.subr.mxu0 0.0
      %2448 = vmatpush1.msra.mxu0 0.0
      %2449 = vmatprep.subr.mxu0 0.0
      %2450 = vmatpush1.msra.mxu0 0.0
      %2451 = vmatprep.subr.mxu0 0.0
      %2452 = vmatpush1.msra.mxu0 0.0
      %2453 = vmatprep.subr.mxu0 0.0
      %2454 = vmatpush1.msra.mxu0 0.0
      %2455 = vmatprep.subr.mxu0 0.0
      %2456 = vmatpush1.msra.mxu0 0.0
      %2457 = vmatprep.subr.mxu0 0.0
      %2458 = vmatpush1.msra.mxu0 0.0
      %2459 = vmatprep.subr.mxu0 0.0
      %2460 = vmatpush1.msra.mxu0 0.0
      %2461 = vmatprep.subr.mxu0 0.0
      %2462 = vmatpush1.msra.mxu0 0.0
      %2463 = vmatprep.subr.mxu0 0.0
      %2464 = vmatpush1.msra.mxu0 0.0
      %2465 = vmatprep.subr.mxu0 0.0
      %2466 = vmatpush1.msra.mxu0 0.0
      %2467 = vmatprep.subr.mxu0 0.0
      %2468 = vmatpush1.msra.mxu0 0.0
      %2469 = vmatprep.subr.mxu0 0.0
      %2470 = vmatpush1.msra.mxu0 0.0
      %2471 = vmatprep.subr.mxu0 0.0
      %2472 = vmatpush1.msra.mxu0 0.0
      %2473 = vmatprep.subr.mxu0 0.0
      %2474 = vmatpush1.msra.mxu0 0.0
      %2475 = vmatprep.subr.mxu0 0.0
      %2476 = vmatpush1.msra.mxu0 0.0
      %2477 = vmatprep.mubr.f32.mxu0 0.0
      %2478 = vmatmul.mubr.f32.gmra.mrb[0].mxu0 %v1897
      %v2479 = vpop.f32.mrb[0].mxu0
      %v2480 = vadd.f32 0.0, %v2479
      %v2481 = vpop.f32.mrb[0].mxu0
      %2482 = vdwg.mxu0
      %v2484 = vlaneseq
      %v2485 = vshrl.u32 %v2484, 7
      %v2486 = vsub.s32 0, %v2485
      %v2487 = vrot.slane %v446, %v2486
      %v2489 = vmul.f32 %v1969, %v2487
      %v2490 = vmul.f32 %v2042, %v2487
      %v2491 = vmul.f32 %v2115, %v2487
      %v2492 = vmul.f32 %v2188, %v2487
      %v2493 = vmul.f32 %v2261, %v2487
      %v2494 = vmul.f32 %v2334, %v2487
      %v2495 = vmul.f32 %v2407, %v2487
      %v2496 = vmul.f32 %v2480, %v2487
      %v2498 = vlaneseq
      %v2499 = vshrl.u32 %v2498, 7
      %v2500 = vsub.s32 0, %v2499
      %v2501 = vrot.slane %v447, %v2500
      %v2503 = vadd.f32 %v2489, %v2501
      %v2504 = vadd.f32 %v2490, %v2501
      %v2505 = vadd.f32 %v2491, %v2501
      %v2506 = vadd.f32 %v2492, %v2501
      %v2507 = vadd.f32 %v2493, %v2501
      %v2508 = vadd.f32 %v2494, %v2501
      %v2509 = vadd.f32 %v2495, %v2501
      %v2510 = vadd.f32 %v2496, %v2501
      %vm2511 = vcmp.gt.f32.partialorder %v2503, 0.0
      %vm2512 = vcmp.gt.f32.partialorder %v2504, 0.0
      %vm2513 = vcmp.gt.f32.partialorder %v2505, 0.0
      %vm2514 = vcmp.gt.f32.partialorder %v2506, 0.0
      %vm2515 = vcmp.gt.f32.partialorder %v2507, 0.0
      %vm2516 = vcmp.gt.f32.partialorder %v2508, 0.0
      %vm2517 = vcmp.gt.f32.partialorder %v2509, 0.0
      %vm2518 = vcmp.gt.f32.partialorder %v2510, 0.0
      %v2520 = vlaneseq
      %v2521 = vshrl.u32 %v2520, 7
      %v2522 = vsub.s32 0, %v2521
      %v2523 = vrot.slane %v448, %v2522
      %v2525 = vmul.f32 %v2523, %v2503
      %v2526 = vmul.f32 %v2523, %v2504
      %v2527 = vmul.f32 %v2523, %v2505
      %v2528 = vmul.f32 %v2523, %v2506
      %v2529 = vmul.f32 %v2523, %v2507
      %v2530 = vmul.f32 %v2523, %v2508
      %v2531 = vmul.f32 %v2523, %v2509
      %v2532 = vmul.f32 %v2523, %v2510
      %v2533 = vsel %vm2511, %v2503, %v2525
      %v2534 = vsel %vm2512, %v2504, %v2526
      %v2535 = vsel %vm2513, %v2505, %v2527
      %v2536 = vsel %vm2514, %v2506, %v2528
      %v2537 = vsel %vm2515, %v2507, %v2529
      %v2538 = vsel %vm2516, %v2508, %v2530
      %v2539 = vsel %vm2517, %v2509, %v2531
      %v2540 = vsel %vm2518, %v2510, %v2532
      %v2541 = vld [vmem:[%s9] sm:$0xff]
      %v2543 = vsel %vm451, %v2533, 0
      %v2546 = vsel %vm451, %v2534, 0
      %v2549 = vsel %vm451, %v2535, 0
      %v2552 = vsel %vm451, %v2536, 0
      %v2555 = vsel %vm451, %v2537, 0
      %v2558 = vsel %vm451, %v2538, 0
      %v2561 = vsel %vm451, %v2539, 0
      %v2564 = vsel %vm451, %v2540, 0
      %2566 = vmatprep.subr.mxu0 0.0
      %2567 = vmatpush1.msra.mxu0 %v2541
      %2568 = vmatprep.subr.mxu0 0.0
      %2569 = vmatpush1.msra.mxu0 0.0
      %2570 = vmatprep.subr.mxu0 0.0
      %2571 = vmatpush1.msra.mxu0 0.0
      %2572 = vmatprep.subr.mxu0 0.0
      %2573 = vmatpush1.msra.mxu0 0.0
      %2574 = vmatprep.subr.mxu0 0.0
      %2575 = vmatpush1.msra.mxu0 0.0
      %2576 = vmatprep.subr.mxu0 0.0
      %2577 = vmatpush1.msra.mxu0 0.0
      %2578 = vmatprep.subr.mxu0 0.0
      %2579 = vmatpush1.msra.mxu0 0.0
      %2580 = vmatprep.subr.mxu0 0.0
      %2581 = vmatpush1.msra.mxu0 0.0
      %2582 = vmatprep.subr.mxu0 0.0
      %2583 = vmatpush1.msra.mxu0 0.0
      %2584 = vmatprep.subr.mxu0 0.0
      %2585 = vmatpush1.msra.mxu0 0.0
      %2586 = vmatprep.subr.mxu0 0.0
      %2587 = vmatpush1.msra.mxu0 0.0
      %2588 = vmatprep.subr.mxu0 0.0
      %2589 = vmatpush1.msra.mxu0 0.0
      %2590 = vmatprep.subr.mxu0 0.0
      %2591 = vmatpush1.msra.mxu0 0.0
      %2592 = vmatprep.subr.mxu0 0.0
      %2593 = vmatpush1.msra.mxu0 0.0
      %2594 = vmatprep.subr.mxu0 0.0
      %2595 = vmatpush1.msra.mxu0 0.0
      %2596 = vmatprep.subr.mxu0 0.0
      %2597 = vmatpush1.msra.mxu0 0.0
      %2598 = vmatprep.subr.mxu0 0.0
      %2599 = vmatpush1.msra.mxu0 0.0
      %2600 = vmatprep.subr.mxu0 0.0
      %2601 = vmatpush1.msra.mxu0 0.0
      %2602 = vmatprep.subr.mxu0 0.0
      %2603 = vmatpush1.msra.mxu0 0.0
      %2604 = vmatprep.subr.mxu0 0.0
      %2605 = vmatpush1.msra.mxu0 0.0
      %2606 = vmatprep.subr.mxu0 0.0
      %2607 = vmatpush1.msra.mxu0 0.0
      %2608 = vmatprep.subr.mxu0 0.0
      %2609 = vmatpush1.msra.mxu0 0.0
      %2610 = vmatprep.subr.mxu0 0.0
      %2611 = vmatpush1.msra.mxu0 0.0
      %2612 = vmatprep.subr.mxu0 0.0
      %2613 = vmatpush1.msra.mxu0 0.0
      %2614 = vmatprep.subr.mxu0 0.0
      %2615 = vmatpush1.msra.mxu0 0.0
      %2616 = vmatprep.subr.mxu0 0.0
      %2617 = vmatpush1.msra.mxu0 0.0
      %2618 = vmatprep.subr.mxu0 0.0
      %2619 = vmatpush1.msra.mxu0 0.0
      %2620 = vmatprep.subr.mxu0 0.0
      %2621 = vmatpush1.msra.mxu0 0.0
      %2622 = vmatprep.subr.mxu0 0.0
      %2623 = vmatpush1.msra.mxu0 0.0
      %2624 = vmatprep.subr.mxu0 0.0
      %2625 = vmatpush1.msra.mxu0 0.0
      %2626 = vmatprep.subr.mxu0 0.0
      %2627 = vmatpush1.msra.mxu0 0.0
      %2628 = vmatprep.subr.mxu0 0.0
      %2629 = vmatpush1.msra.mxu0 0.0
      %2630 = vmatprep.mubr.f32.mxu0 0.0
      %2631 = vmatmul.mubr.f32.gmra.mrb[0].mxu0 %v2543
      %v2632 = vpop.f32.mrb[0].mxu0
      %v2633 = vadd.f32 0.0, %v2632
      %v2634 = vpop.f32.mrb[0].mxu0
      %2635 = vmatprep.mubr.f32.mxu0 0.0
      %2636 = vmatmul.mubr.f32.gmra.mrb[0].mxu0 %v2546
      %v2637 = vpop.f32.mrb[0].mxu0
      %v2638 = vadd.f32 0.0, %v2637
      %v2639 = vpop.f32.mrb[0].mxu0
      %2640 = vmatprep.mubr.f32.mxu0 0.0
      %2641 = vmatmul.mubr.f32.gmra.mrb[0].mxu0 %v2549
      %v2642 = vpop.f32.mrb[0].mxu0
      %v2643 = vadd.f32 0.0, %v2642
      %v2644 = vpop.f32.mrb[0].mxu0
      %2645 = vmatprep.mubr.f32.mxu0 0.0
      %2646 = vmatmul.mubr.f32.gmra.mrb[0].mxu0 %v2552
      %v2647 = vpop.f32.mrb[0].mxu0
      %v2648 = vadd.f32 0.0, %v2647
      %v2649 = vpop.f32.mrb[0].mxu0
      %2650 = vmatprep.mubr.f32.mxu0 0.0
      %2651 = vmatmul.mubr.f32.gmra.mrb[0].mxu0 %v2555
      %v2652 = vpop.f32.mrb[0].mxu0
      %v2653 = vadd.f32 0.0, %v2652
      %v2654 = vpop.f32.mrb[0].mxu0
      %2655 = vmatprep.mubr.f32.mxu0 0.0
      %2656 = vmatmul.mubr.f32.gmra.mrb[0].mxu0 %v2558
      %v2657 = vpop.f32.mrb[0].mxu0
      %v2658 = vadd.f32 0.0, %v2657
      %v2659 = vpop.f32.mrb[0].mxu0
      %2660 = vmatprep.mubr.f32.mxu0 0.0
      %2661 = vmatmul.mubr.f32.gmra.mrb[0].mxu0 %v2561
      %v2662 = vpop.f32.mrb[0].mxu0
      %v2663 = vadd.f32 0.0, %v2662
      %v2664 = vpop.f32.mrb[0].mxu0
      %2665 = vmatprep.mubr.f32.mxu0 0.0
      %2666 = vmatmul.mubr.f32.gmra.mrb[0].mxu0 %v2564
      %v2667 = vpop.f32.mrb[0].mxu0
      %v2668 = vadd.f32 0.0, %v2667
      %v2669 = vpop.f32.mrb[0].mxu0
      %2670 = vdwg.mxu0
      %v2672 = vlaneseq
      %v2673 = vshrl.u32 %v2672, 7
      %v2674 = vsub.s32 0, %v2673
      %v2675 = vrot.slane %v449, %v2674
      %v2677 = vmul.f32 %v2633, %v2675
      %v2678 = vmul.f32 %v2638, %v2675
      %v2679 = vmul.f32 %v2643, %v2675
      %v2680 = vmul.f32 %v2648, %v2675
      %v2681 = vmul.f32 %v2653, %v2675
      %v2682 = vmul.f32 %v2658, %v2675
      %v2683 = vmul.f32 %v2663, %v2675
      %v2684 = vmul.f32 %v2668, %v2675
      %v2686 = vlaneseq
      %v2687 = vshrl.u32 %v2686, 7
      %v2688 = vsub.s32 0, %v2687
      %v2689 = vrot.slane %v450, %v2688
      %v2691 = vadd.f32 %v2677, %v2689
      %v2692 = vadd.f32 %v2678, %v2689
      %v2693 = vadd.f32 %v2679, %v2689
      %v2694 = vadd.f32 %v2680, %v2689
      %v2695 = vadd.f32 %v2681, %v2689
      %v2696 = vadd.f32 %v2682, %v2689
      %v2697 = vadd.f32 %v2683, %v2689
      %v2698 = vadd.f32 %v2684, %v2689
      %2699 = vst.msk [vmem:[%s440] sm:$0xff] %vm451, %v2691
      %2700 = vst.msk [vmem:[%s440 + $0x8] sm:$0xff] %vm451, %v2692
      %2701 = vst.msk [vmem:[%s440 + $0x10] sm:$0xff] %vm451, %v2693
      %2702 = vst.msk [vmem:[%s440 + $0x18] sm:$0xff] %vm451, %v2694
      %2703 = vst.msk [vmem:[%s440 + $0x20] sm:$0xff] %vm451, %v2695
      %2704 = vst.msk [vmem:[%s440 + $0x28] sm:$0xff] %vm451, %v2696
      %2705 = vst.msk [vmem:[%s440 + $0x30] sm:$0xff] %vm451, %v2697
      %2706 = vst.msk [vmem:[%s440 + $0x38] sm:$0xff] %vm451, %v2698
      %p2707 = scmp.lt.s32.totalorder %s24, 1
      %s2708 = scalar_select %p2707, %s24, 1
      %s2709 = smul.addr %s2708, 8
      %s2710 = smul.addr %s2709, 8
      %s2711 = scalar_lea.vmem %s13, %s2710
      // Predicated region
      $region73: #{tpu_custom_call.1} parent=71 // pred_check
        %p2712 = pneg %p320
      $region74: #{tpu_custom_call.1} parent=71 // pred_check_branch
        %2714 = sbr.rel (%p2712) target = $region76
      $region75: #{tpu_custom_call.1} parent=71 // pred_region
        _
      $region76: #{tpu_custom_call.1} parent=71 // pred_fallthru
        _
    $region72: #{tpu_custom_call.1} parent=5 // pred_fallthru
      _
    %p2715 = scmp.le.s32.totalorder 2, %s19
    // Predicated region
    $region77: #{tpu_custom_call.1} parent=5 // pred_check
      %p2716 = pneg %p2715
    $region78: #{tpu_custom_call.1} parent=5 // pred_check_branch
      %2718 = sbr.rel (%p2716) target = $region80
    $region79: #{tpu_custom_call.1} parent=5 // pred_region
      %s2719 = ssub.s32 %s19, 2
      // Predicated region
      $region81: #{tpu_custom_call.1} parent=79 // pred_check
        %p2720 = pneg %p326
      $region82: #{tpu_custom_call.1} parent=79 // pred_check_branch
        %2722 = sbr.rel (%p2720) target = $region84
      $region83: #{tpu_custom_call.1} parent=79 // pred_region
        %p2723 = scmp.lt.s32.totalorder %s25, 1
        %s2724 = scalar_select %p2723, %s25, 1
        %s2725 = smul.addr %s2724, 8
        %s2726 = smul.addr %s2725, 8
        %s2727 = scalar_lea.vmem %s13, %s2726
      $region84: #{tpu_custom_call.1} parent=79 // pred_fallthru
        _
    $region80: #{tpu_custom_call.1} parent=5 // pred_fallthru
      _
  $region6: #{tpu_custom_call.1} parent=0 // loop_footer
    %s23 = sadd.s32 1, %s19
  $region7: #{tpu_custom_call.1} parent=0 // loop_footer_branch
    %18 = sbr.rel target = $region3
  $region8: #{tpu_custom_call.1} parent=0 // loop_exit
    _

</llo_original>
